<compile_context>
chip_gen: v5e
topology: v5e:2x2
jax: 0.10.0
libtpu: 0.0.40
codegen_flags: <defaults>
</compile_context>

<pallas_src>
import jax
import jax.numpy as jnp
from jax.experimental import pallas as pl
from jax.experimental.pallas import tpu as pltpu

LANE = 128


def _tpu_vmem_bytes():
    """Physical VMEM per TensorCore (generation-aware); conservative fallback."""
    try:
        cap = getattr(pltpu.get_tpu_info(), "vmem_capacity_bytes", None)
        if cap:
            return int(cap)
    except Exception:
        pass
    return 64 * 1024 * 1024          # v7x-sized conservative default


def _choose_tile_h(H, W, Wp, Cout_pad, has_res, vmem_cap):
    """Largest divisor of H whose per-tile VMEM footprint fits the budget.

    Row cap is generation-aware: <=512 output rows on 64 MiB parts (v7x),
    <=2048 on 128 MiB parts (v5e/v6e) to amortize the ~0.35us/grid-step
    overhead.  tile_h=1 is always a valid fallback.
    """
    max_rows = 512 if vmem_cap <= 64 * 1024 * 1024 else 2048
    # per output row: f32 accumulator + double-buffered bf16 out (+ residual)
    per_row = Wp * Cout_pad * 4 + 2 * W * Cout_pad * 2 * (2 if has_res else 1)
    budget = vmem_cap // 2           # headroom for resident input/weights + internal scratch
    best = 1
    for th in range(1, H + 1):
        if H % th == 0 and th * W <= max_rows and th * per_row <= budget:
            best = th
    return best


def _make_conv_mask_kernel(KH, tile_h, W, Wp, Cout_pad, n_tiles_per_split, has_residual):
    """Build the fused kernel. One grid step == one (batch, split, row-tile)."""
    TILE_ROWS = tile_h * Wp          # MXU rows per step (includes Wp-W wrap columns/row)

    def kernel(xw_ref, w_ref, bns_ref, bnb_ref, bin_ref, *rest):
        # xw_ref  : (FLATP, KW*Cin)  bf16  width-folded padded input, resident per batch
        # w_ref   : (KH, KW*Cin, Cout_pad) bf16 conv weight taps, resident
        # bns/bnb : (1, 1, Cout_pad) f32   folded BN scale / shift (+conv bias)
        # bin_ref : (1, 1, Cout_pad) f32   predicted binary channel mask
        # res_ref : (tile_h, W, Cout_pad) bf16 (only when has_residual)
        # out_ref : (tile_h, W, Cout_pad) bf16 masked activations
        # acts_ref: (1, 1, Cout_pad) f32   running spatial max of |out| (pre-mask)
        # acc_ref : (TILE_ROWS, Cout_pad) f32 VMEM scratch accumulator
        if has_residual:
            res_ref, out_ref, acts_ref, acc_ref = rest
        else:
            res_ref = None
            out_ref, acts_ref, acc_ref = rest

        s = pl.program_id(1)
        t = pl.program_id(2)
        row0 = (s * n_tiles_per_split + t) * tile_h      # first output row of this tile

        # --- 3x3 conv: KH accumulated MXU matmuls with K = KW*Cin (width taps
        #     folded into the contraction). Each LHS is a contiguous, 16-aligned
        #     sublane window of the resident buffer -> no in-kernel im2col copies.
        for kh in range(KH):
            start = pl.multiple_of((row0 + kh) * Wp, 16)         # Wp % 16 == 0
            lhs = xw_ref[pl.ds(start, TILE_ROWS), :]             # (TILE_ROWS, KW*Cin) bf16
            tap = jnp.dot(lhs, w_ref[kh], preferred_element_type=jnp.float32)
            if kh == 0:
                acc_ref[...] = tap
            else:
                acc_ref[...] += tap

        # Drop the Wp-W wrap columns (Wp multiple of 8/16 => tile-friendly slice),
        # then fused BN(+bias) + optional residual + ReLU in f32.
        conv = acc_ref[...].reshape(tile_h, Wp, Cout_pad)[:, :W, :]
        out = conv * bns_ref[...] + bnb_ref[...]
        if has_residual:
            out = out + res_ref[...].astype(jnp.float32)
        out = jnp.maximum(out, 0.0)

        # gt-mask criterion: spatial max of |out| (post-ReLU => abs redundant),
        # accumulated across the row-tile axis in the resident acts output block.
        tile_max = jnp.max(out, axis=(0, 1), keepdims=True)      # (1, 1, Cout_pad)

        @pl.when(t == 0)
        def _():
            acts_ref[...] = jnp.zeros_like(acts_ref)

        acts_ref[...] = jnp.maximum(acts_ref[...], tile_max)

        # Apply the predicted binary channel mask; lane-dense bf16 store.
        out_ref[...] = (out * bin_ref[...]).astype(out_ref.dtype)

    return kernel


def _gt_mask_mass(acts, ratio, delta=1e-5):
    """get_gt_mask_ratio ('mass'): tiny (B, C) sort/cumsum kept in plain JAX."""
    if ratio < 0:
        return jnp.ones_like(acts)
    denom = jnp.sum(acts, axis=1, keepdims=True)
    normalized = acts / jnp.where(denom > 0, denom, 1.0)     # guard all-zero rows (NaN)
    if ratio == 1:
        return jnp.where(normalized <= delta, 0.0, 1.0)
    order = jnp.argsort(-normalized, axis=1)                 # descending
    sorted_acts = jnp.take_along_axis(normalized, order, axis=1)
    cumsum = jnp.cumsum(sorted_acts, axis=1)
    keep_sorted = jnp.where(cumsum - ratio > delta, 0.0, 1.0)
    bsz = acts.shape[0]
    gt = jnp.ones_like(acts)
    gt = gt.at[jnp.arange(bsz)[:, None], order].set(keep_sorted)
    return gt


def conv_with_mask_forward(x, all_mask_logits, all_gt_mask, prev, params,
                           residual=None, ratio=0.75, tile_h=None,
                           spatial_splits=None, out_layout="NCHW"):
    """Forward pass of ConvWithMask. x is NCHW (PyTorch convention)."""
    B, Cin, H, W = x.shape
    conv_w = params["conv_w"]
    Cout, _, KH, KW = conv_w.shape
    eps = 1e-5
    # Cout is lane-padded to a 128 multiple for lane-dense MXU columns / stores.
    # (For very small Cout, e.g. the toy's 8->128, this inflates the HBM write;
    #  real layers have Cout >= 64 so the waste is <= 2x and the store is fast.)
    Cout_pad = ((Cout + LANE - 1) // LANE) * LANE
    Wp = ((W + 2 + 15) // 16) * 16        # padded row period, 16-aligned (bf16 sublane tile)
    FLATP = (H + 2) * Wp
    KWC = KW * Cin

    vmem_cap = _tpu_vmem_bytes()
    vmem_limit = max(32 * 1024 * 1024, vmem_cap * 3 // 4)    # ~48 MiB v7x, ~96 MiB v5e/v6e

    has_res = residual is not None
    if tile_h is None:
        tile_h = _choose_tile_h(H, W, Wp, Cout_pad, has_res, vmem_cap)
    assert H % tile_h == 0, "tile_h must divide H"
    NT = H // tile_h
    if spatial_splits is None:
        # keep both v7x TensorCores busy for small-batch inference
        spatial_splits = 2 if (B == 1 and NT % 2 == 0) else 1
    NS = spatial_splits
    assert NT % NS == 0, "spatial_splits must divide the number of row tiles"
    NTS = NT // NS
    TILE_ROWS = tile_h * Wp

    # ---- input prep (gp shares the same x_nhwc traversal as the conv input) ----
    x_nhwc = jnp.transpose(x, (0, 2, 3, 1))                      # (B, H, W, Cin) f32
    gp = jnp.mean(x_nhwc, axis=(1, 2))                           # AdaptiveAvgPool2d(1) -> (B, Cin)

    x_pad = jnp.pad(x_nhwc, ((0, 0), (1, 1), (1, Wp - W - 1), (0, 0)))   # (B, H+2, Wp, Cin)
    x_flat = x_pad.reshape(B, FLATP, Cin)
    # width-fold: xw[b, p, kw*Cin:(kw+1)*Cin] = x_flat[b, p + kw, :]
    x_sh = jnp.pad(x_flat, ((0, 0), (0, KW - 1), (0, 0)))
    xw = jnp.concatenate([x_sh[:, kw:kw + FLATP, :] for kw in range(KW)],
                         axis=-1).astype(jnp.bfloat16)           # (B, FLATP, KW*Cin)
    # TODO(synk): for very large H*W*Cin the per-batch resident xw block may exceed
    # VMEM (esp. 64 MiB v7x); switch to halo row-tiles streamed via the t index_map.

    # conv weight (Cout,Cin,KH,KW) -> (KH, KW*Cin, Cout_pad) bf16, kw-major / ci-minor
    w_k = jnp.transpose(conv_w, (2, 3, 1, 0)).reshape(KH, KWC, Cout)
    w_k = jnp.pad(w_k, ((0, 0), (0, 0), (0, Cout_pad - Cout))).astype(jnp.bfloat16)

    # fold conv bias + eval-mode BatchNorm into scale/shift (padded channels -> 0)
    bn_scale = params["bn_gamma"] / jnp.sqrt(params["bn_var"] + eps)
    bn_shift = params["bn_beta"] + bn_scale * (params["conv_b"] - params["bn_mean"])
    bn_scale = jnp.pad(bn_scale, (0, Cout_pad - Cout)).reshape(1, 1, Cout_pad).astype(jnp.float32)
    bn_shift = jnp.pad(bn_shift, (0, Cout_pad - Cout)).reshape(1, 1, Cout_pad).astype(jnp.float32)

    # ---- mask predictor hoisted to plain JAX (AdaptiveAvgPool2d(1) -> 1x1 conv
    #      -> sigmoid -> 0.5 binarize); an M=1 matmul is wasted on the MXU ----
    mask_w = params["mask_w"].reshape(Cout, Cin)
    logit = gp @ mask_w.T + params["mask_b"].reshape(1, Cout)    # (B, Cout)
    # BinarizerSTEStatic forward: strict '>' (inputs.gt(threshold)); ties at 0.5 -> 0.
    binary = (jax.nn.sigmoid(logit) > 0.5).astype(jnp.float32)
    binary_pad = jnp.pad(binary, ((0, 0), (0, Cout_pad - Cout))).reshape(B, 1, 1, Cout_pad)

    inputs = [xw, w_k, bn_scale, bn_shift, binary_pad]
    in_specs = [
        pl.BlockSpec((None, FLATP, KWC), lambda b, s, t: (b, 0, 0)),       # resident per batch
        pl.BlockSpec((KH, KWC, Cout_pad), lambda b, s, t: (0, 0, 0)),      # resident
        pl.BlockSpec((1, 1, Cout_pad), lambda b, s, t: (0, 0, 0)),
        pl.BlockSpec((1, 1, Cout_pad), lambda b, s, t: (0, 0, 0)),
        pl.BlockSpec((None, 1, 1, Cout_pad), lambda b, s, t: (b, 0, 0, 0)),
    ]
    if has_res:
        res_nhwc = jnp.transpose(residual, (0, 2, 3, 1))
        res_nhwc = jnp.pad(res_nhwc, ((0, 0), (0, 0), (0, 0), (0, Cout_pad - Cout))
                           ).astype(jnp.bfloat16)                          # bf16 residual stream
        inputs.append(res_nhwc)
        in_specs.append(pl.BlockSpec((None, tile_h, W, Cout_pad),
                                     lambda b, s, t: (b, s * NTS + t, 0, 0)))

    kernel = _make_conv_mask_kernel(KH, tile_h, W, Wp, Cout_pad, NTS, has_res)

    flops = 2 * B * H * W * KH * KW * Cin * Cout_pad
    bytes_accessed = (int(xw.size) * 2 + int(w_k.size) * 2
                      + B * H * W * Cout_pad * 2 * (2 if has_res else 1)
                      + B * NS * Cout_pad * 4)

    out_nhwc, acts = pl.pallas_call(
        kernel,
        grid=(B, NS, NTS),
        in_specs=in_specs,
        out_specs=(
            pl.BlockSpec((None, tile_h, W, Cout_pad), lambda b, s, t: (b, s * NTS + t, 0, 0)),
            pl.BlockSpec((None, 1, 1, Cout_pad), lambda b, s, t: (b, s, 0, 0)),  # acts accum
        ),
        out_shape=(
            jax.ShapeDtypeStruct((B, H, W, Cout_pad), jnp.bfloat16),   # masked activations
            jax.ShapeDtypeStruct((B, NS, 1, Cout_pad), jnp.float32),   # per-split max|out|
        ),
        scratch_shapes=[pltpu.VMEM((TILE_ROWS, Cout_pad), jnp.float32)],
        compiler_params=pltpu.CompilerParams(
            dimension_semantics=("parallel", "parallel", "arbitrary"),
            vmem_limit_bytes=int(vmem_limit)),
        cost_estimate=pl.CostEstimate(flops=flops, transcendentals=0,
                                      bytes_accessed=bytes_accessed),
    )(*inputs)

    # reduce per-split partial maxima, strip lane padding
    acts = jnp.max(acts, axis=1)[:, 0, :Cout]                    # (B, Cout)

    if out_layout == "NHWC":
        out = out_nhwc[..., :Cout]                               # bf16, no extra HBM round trip
    else:
        # NCHW to match the PyTorch module (costs one extra transpose pass in XLA).
        out = jnp.transpose(out_nhwc[..., :Cout], (0, 3, 1, 2)).astype(jnp.float32)

    mask_logit = logit.reshape(B, Cout, 1, 1)
    gt_mask = _gt_mask_mass(acts, ratio).reshape(B, Cout, 1, 1)

    all_mask_logits = all_mask_logits + [mask_logit]
    all_gt_mask = all_gt_mask + [gt_mask]

    active_cur = jnp.sum(binary, axis=1)                         # (B,)
    output_sz = H * W
    k = KH * KW
    g = 1
    bias_ops = 0
    FLOPs = active_cur * output_sz * (prev // g * k + bias_ops)
    return out, all_mask_logits, active_cur, all_gt_mask, FLOPs


def _reference_forward(x, params, residual, ratio):
    """Plain-JAX reference mirroring the kernel's intentional bf16 casts."""
    eps = 1e-5
    B, Cin, H, W = x.shape
    conv_w = params["conv_w"]
    Cout, _, KH, KW = conv_w.shape
    xb = jnp.transpose(x, (0, 2, 3, 1)).astype(jnp.bfloat16).astype(jnp.float32)
    wb = conv_w.astype(jnp.bfloat16).astype(jnp.float32)
    xp = jnp.pad(xb, ((0, 0), (1, 1), (1, 1), (0, 0)))
    acc = jnp.zeros((B, H, W, Cout), jnp.float32)
    for kh in range(KH):
        for kw in range(KW):
            win = xp[:, kh:kh + H, kw:kw + W, :]
            acc = acc + jnp.einsum('bhwc,oc->bhwo', win, wb[:, :, kh, kw],
                                   precision=jax.lax.Precision.HIGHEST)
    scale = params["bn_gamma"] / jnp.sqrt(params["bn_var"] + eps)
    shift = params["bn_beta"] + scale * (params["conv_b"] - params["bn_mean"])
    out = acc * scale + shift
    if residual is not None:
        res = jnp.transpose(residual, (0, 2, 3, 1)).astype(jnp.bfloat16).astype(jnp.float32)
        out = out + res
    out = jnp.maximum(out, 0.0)
    gp = jnp.mean(x, axis=(2, 3))
    logit = gp @ params["mask_w"].reshape(Cout, Cin).T + params["mask_b"].reshape(1, Cout)
    binary = (jax.nn.sigmoid(logit) > 0.5).astype(jnp.float32)
    out_masked = (out * binary[:, None, None, :]).astype(jnp.bfloat16).astype(jnp.float32)
    return jnp.transpose(out_masked, (0, 3, 1, 2)), logit.reshape(B, Cout, 1, 1)


if __name__ == "__main__":
    B, Cin, Cout, H, W = 2, 4, 8, 16, 16
    KH = KW = 3

    key = jax.random.PRNGKey(0)
    k = jax.random.split(key, 10)
    x = jax.random.normal(k[0], (B, Cin, H, W), dtype=jnp.float32)

    params = dict(
        conv_w=0.2 * jax.random.normal(k[1], (Cout, Cin, KH, KW), jnp.float32),
        conv_b=0.1 * jax.random.normal(k[2], (Cout,), jnp.float32),
        bn_gamma=1.0 + 0.1 * jax.random.normal(k[3], (Cout,), jnp.float32),
        bn_beta=0.1 * jax.random.normal(k[4], (Cout,), jnp.float32),
        bn_mean=0.1 * jax.random.normal(k[5], (Cout,), jnp.float32),
        bn_var=1.0 + jnp.abs(jax.random.normal(k[6], (Cout,), jnp.float32)),
        mask_w=0.5 * jax.random.normal(k[7], (Cout, Cin, 1, 1), jnp.float32),
        mask_b=0.1 * jax.random.normal(k[8], (Cout,), jnp.float32),
    )
    residual = 0.1 * jax.random.normal(k[9], (B, Cout, H, W), jnp.float32)

    # tile_h=8 -> two row tiles per batch; spatial_splits=1 exercises the
    # resident acts-accumulator path, spatial_splits=2 the per-split reduction.
    for res in (None, residual):
        for splits in (1, 2):
            out, all_logits, active_cur, all_gt, flops = conv_with_mask_forward(
                x, [], [], prev=Cin, params=params, residual=res, ratio=0.75,
                tile_h=8, spatial_splits=splits)

            jax.block_until_ready(out)
            jax.block_until_ready(all_logits[-1])
            jax.block_until_ready(all_gt[-1])
            jax.block_until_ready(active_cur)
            jax.block_until_ready(flops)

            assert out.shape == (B, Cout, H, W)
            assert all_logits[-1].shape == (B, Cout, 1, 1)
            assert all_gt[-1].shape == (B, Cout, 1, 1)
            assert active_cur.shape == (B,)
            assert flops.shape == (B,)

            out_ref, logit_ref = _reference_forward(x, params, res, 0.75)
            assert bool(jnp.allclose(out, out_ref, atol=1e-2, rtol=1e-2))
            assert bool(jnp.allclose(all_logits[-1], logit_ref, atol=1e-4, rtol=1e-4))

    print("KERNEL_OK")
</pallas_src>

<mosaic_0001>
module attributes {stable_mosaic.version = 11 : i64} {
  func.func @kernel(%arg0: i32, %arg1: i32, %arg2: i32, %arg3: memref<1x576x12xbf16, #tpu.memory_space<vmem>>, %arg4: memref<3x12x128xbf16, #tpu.memory_space<vmem>>, %arg5: memref<1x1x128xf32, #tpu.memory_space<vmem>>, %arg6: memref<1x1x128xf32, #tpu.memory_space<vmem>>, %arg7: memref<1x1x1x128xf32, #tpu.memory_space<vmem>>, %arg8: memref<1x8x16x128xbf16, #tpu.memory_space<vmem>>, %arg9: memref<1x1x1x128xf32, #tpu.memory_space<vmem>>, %arg10: memref<256x128xf32, #tpu.memory_space<vmem>>) attributes {dimension_semantics = [#tpu.dimension_semantics<parallel>, #tpu.dimension_semantics<parallel>, #tpu.dimension_semantics<arbitrary>], iteration_bounds = array<i64: 2, 1, 2>, scalar_prefetch = 0 : i64, scratch_operands = 1 : i64, tpu.core_type = #tpu.core_type<tc>, window_params = [{transform_indices = @transform_0, window_bounds = array<i64: 1, 576, 12>}, {pipeline_mode = #tpu.pipeline_mode<synchronous>, transform_indices = @transform_1, window_bounds = array<i64: 3, 12, 128>}, {pipeline_mode = #tpu.pipeline_mode<synchronous>, transform_indices = @transform_2, window_bounds = array<i64: 1, 1, 128>}, {pipeline_mode = #tpu.pipeline_mode<synchronous>, transform_indices = @transform_3, window_bounds = array<i64: 1, 1, 128>}, {transform_indices = @transform_4, window_bounds = array<i64: 1, 1, 1, 128>}, {transform_indices = @transform_5, window_bounds = array<i64: 1, 8, 16, 128>}, {transform_indices = @transform_6, window_bounds = array<i64: 1, 1, 1, 128>}]} {
    %c2_i32 = arith.constant 2 : i32
    %0 = arith.muli %arg1, %c2_i32 : i32
    %1 = arith.addi %0, %arg2 : i32
    %c8_i32 = arith.constant 8 : i32
    %2 = arith.muli %1, %c8_i32 : i32
    %c0_i32 = arith.constant 0 : i32
    %3 = arith.addi %2, %c0_i32 : i32
    %c32_i32 = arith.constant 32 : i32
    %4 = arith.muli %3, %c32_i32 : i32
    %5 = tpu.assume_multiple %4, 16 : i32
    %c0 = arith.constant 0 : index
    %6 = arith.index_cast %5 : i32 to index
    %c0_0 = arith.constant 0 : index
    %7 = vector.load %arg3[%c0, %6, %c0_0] : memref<1x576x12xbf16, #tpu.memory_space<vmem>>, vector<1x256x12xbf16>
    %8 = vector.shape_cast %7 : vector<1x256x12xbf16> to vector<256x12xbf16>
    %c0_1 = arith.constant 0 : index
    %c0_2 = arith.constant 0 : index
    %c0_3 = arith.constant 0 : index
    %9 = vector.load %arg4[%c0_1, %c0_2, %c0_3] : memref<3x12x128xbf16, #tpu.memory_space<vmem>>, vector<1x12x128xbf16>
    %10 = vector.shape_cast %9 : vector<1x12x128xbf16> to vector<12x128xbf16>
    %cst = arith.constant dense<0.000000e+00> : vector<256x128xf32>
    %11 = tpu.matmul %8, %10, %cst {dimension_numbers = #tpu.dot_dimension_numbers<[1], [0], [0], [1], [0, 0, 1, 1], [], []>} : vector<256x12xbf16>, vector<12x128xbf16>, vector<256x128xf32> -> vector<256x128xf32>
    %c0_4 = arith.constant 0 : index
    %c0_5 = arith.constant 0 : index
    %12 = vector.load %arg10[%c0_4, %c0_5] : memref<256x128xf32, #tpu.memory_space<vmem>>, vector<256x128xf32>
    tpu.vector_store %arg10[%c0_4, %c0_5], %11 {strides = array<i32>} : memref<256x128xf32, #tpu.memory_space<vmem>>, vector<256x128xf32>,
    %c1_i32 = arith.constant 1 : i32
    %13 = arith.addi %2, %c1_i32 : i32
    %c32_i32_6 = arith.constant 32 : i32
    %14 = arith.muli %13, %c32_i32_6 : i32
    %15 = tpu.assume_multiple %14, 16 : i32
    %c0_7 = arith.constant 0 : index
    %16 = arith.index_cast %15 : i32 to index
    %c0_8 = arith.constant 0 : index
    %17 = vector.load %arg3[%c0_7, %16, %c0_8] : memref<1x576x12xbf16, #tpu.memory_space<vmem>>, vector<1x256x12xbf16>
    %18 = vector.shape_cast %17 : vector<1x256x12xbf16> to vector<256x12xbf16>
    %c1 = arith.constant 1 : index
    %c0_9 = arith.constant 0 : index
    %c0_10 = arith.constant 0 : index
    %19 = vector.load %arg4[%c1, %c0_9, %c0_10] : memref<3x12x128xbf16, #tpu.memory_space<vmem>>, vector<1x12x128xbf16>
    %20 = vector.shape_cast %19 : vector<1x12x128xbf16> to vector<12x128xbf16>
    %cst_11 = arith.constant dense<0.000000e+00> : vector<256x128xf32>
    %21 = tpu.matmul %18, %20, %cst_11 {dimension_numbers = #tpu.dot_dimension_numbers<[1], [0], [0], [1], [0, 0, 1, 1], [], []>} : vector<256x12xbf16>, vector<12x128xbf16>, vector<256x128xf32> -> vector<256x128xf32>
    %c0_12 = arith.constant 0 : index
    %c0_13 = arith.constant 0 : index
    %22 = vector.load %arg10[%c0_12, %c0_13] : memref<256x128xf32, #tpu.memory_space<vmem>>, vector<256x128xf32>
    %23 = arith.addf %22, %21 : vector<256x128xf32>
    %c0_14 = arith.constant 0 : index
    %c0_15 = arith.constant 0 : index
    %24 = vector.load %arg10[%c0_14, %c0_15] : memref<256x128xf32, #tpu.memory_space<vmem>>, vector<256x128xf32>
    tpu.vector_store %arg10[%c0_14, %c0_15], %23 {strides = array<i32>} : memref<256x128xf32, #tpu.memory_space<vmem>>, vector<256x128xf32>,
    %c2_i32_16 = arith.constant 2 : i32
    %25 = arith.addi %2, %c2_i32_16 : i32
    %c32_i32_17 = arith.constant 32 : i32
    %26 = arith.muli %25, %c32_i32_17 : i32
    %27 = tpu.assume_multiple %26, 16 : i32
    %c0_18 = arith.constant 0 : index
    %28 = arith.index_cast %27 : i32 to index
    %c0_19 = arith.constant 0 : index
    %29 = vector.load %arg3[%c0_18, %28, %c0_19] : memref<1x576x12xbf16, #tpu.memory_space<vmem>>, vector<1x256x12xbf16>
    %30 = vector.shape_cast %29 : vector<1x256x12xbf16> to vector<256x12xbf16>
    %c2 = arith.constant 2 : index
    %c0_20 = arith.constant 0 : index
    %c0_21 = arith.constant 0 : index
    %31 = vector.load %arg4[%c2, %c0_20, %c0_21] : memref<3x12x128xbf16, #tpu.memory_space<vmem>>, vector<1x12x128xbf16>
    %32 = vector.shape_cast %31 : vector<1x12x128xbf16> to vector<12x128xbf16>
    %cst_22 = arith.constant dense<0.000000e+00> : vector<256x128xf32>
    %33 = tpu.matmul %30, %32, %cst_22 {dimension_numbers = #tpu.dot_dimension_numbers<[1], [0], [0], [1], [0, 0, 1, 1], [], []>} : vector<256x12xbf16>, vector<12x128xbf16>, vector<256x128xf32> -> vector<256x128xf32>
    %c0_23 = arith.constant 0 : index
    %c0_24 = arith.constant 0 : index
    %34 = vector.load %arg10[%c0_23, %c0_24] : memref<256x128xf32, #tpu.memory_space<vmem>>, vector<256x128xf32>
    %35 = arith.addf %34, %33 : vector<256x128xf32>
    %c0_25 = arith.constant 0 : index
    %c0_26 = arith.constant 0 : index
    %36 = vector.load %arg10[%c0_25, %c0_26] : memref<256x128xf32, #tpu.memory_space<vmem>>, vector<256x128xf32>
    tpu.vector_store %arg10[%c0_25, %c0_26], %35 {strides = array<i32>} : memref<256x128xf32, #tpu.memory_space<vmem>>, vector<256x128xf32>,
    %c0_27 = arith.constant 0 : index
    %c0_28 = arith.constant 0 : index
    %37 = vector.load %arg10[%c0_27, %c0_28] : memref<256x128xf32, #tpu.memory_space<vmem>>, vector<256x128xf32>
    %38 = vector.shape_cast %37 : vector<256x128xf32> to vector<8x32x128xf32>
    %39 = vector.extract_strided_slice %38 {offsets = [0, 0, 0], sizes = [8, 16, 128], strides = [1, 1, 1]} : vector<8x32x128xf32> to vector<8x16x128xf32>
    %c0_29 = arith.constant 0 : index
    %c0_30 = arith.constant 0 : index
    %c0_31 = arith.constant 0 : index
    %40 = vector.load %arg5[%c0_29, %c0_30, %c0_31] : memref<1x1x128xf32, #tpu.memory_space<vmem>>, vector<1x1x128xf32>
    %41 = vector.broadcast %40 : vector<1x1x128xf32> to vector<8x16x128xf32>
    %42 = arith.mulf %39, %41 : vector<8x16x128xf32>
    %c0_32 = arith.constant 0 : index
    %c0_33 = arith.constant 0 : index
    %c0_34 = arith.constant 0 : index
    %43 = vector.load %arg6[%c0_32, %c0_33, %c0_34] : memref<1x1x128xf32, #tpu.memory_space<vmem>>, vector<1x1x128xf32>
    %44 = vector.broadcast %43 : vector<1x1x128xf32> to vector<8x16x128xf32>
    %45 = arith.addf %42, %44 : vector<8x16x128xf32>
    %cst_35 = arith.constant 0.000000e+00 : f32
    %46 = vector.broadcast %cst_35 : f32 to vector<8x16x128xf32>
    %47 = arith.maximumf %45, %46 : vector<8x16x128xf32>
    %cst_36 = arith.constant dense<0xFF800000> : vector<128xf32>
    %48 = vector.multi_reduction <maximumf>, %47, %cst_36 [0, 1] : vector<8x16x128xf32> to vector<128xf32>
    %49 = vector.shape_cast %48 : vector<128xf32> to vector<1x1x128xf32>
    %c0_i32_37 = arith.constant 0 : i32
    %50 = arith.cmpi eq, %arg2, %c0_i32_37 : i32
    %51 = arith.extui %50 : i1 to i32
    %c0_i32_38 = arith.constant 0 : i32
    %52 = arith.cmpi ne, %51, %c0_i32_38 : i32
    scf.if %52 {
      %cst_55 = arith.constant 0.000000e+00 : f32
      %67 = vector.broadcast %cst_55 : f32 to vector<1x1x128xf32>
      %c0_56 = arith.constant 0 : index
      %c0_57 = arith.constant 0 : index
      %c0_58 = arith.constant 0 : index
      %c0_59 = arith.constant 0 : index
      %68 = vector.load %arg9[%c0_56, %c0_57, %c0_58, %c0_59] : memref<1x1x1x128xf32, #tpu.memory_space<vmem>>, vector<1x1x1x128xf32>
      %69 = vector.shape_cast %68 : vector<1x1x1x128xf32> to vector<1x1x128xf32>
      %70 = vector.shape_cast %67 : vector<1x1x128xf32> to vector<1x1x1x128xf32>
      tpu.vector_store %arg9[%c0_56, %c0_57, %c0_58, %c0_59], %70 {strides = array<i32>} : memref<1x1x1x128xf32, #tpu.memory_space<vmem>>, vector<1x1x1x128xf32>,
    } else {
    }
    %c0_39 = arith.constant 0 : index
    %c0_40 = arith.constant 0 : index
    %c0_41 = arith.constant 0 : index
    %c0_42 = arith.constant 0 : index
    %53 = vector.load %arg9[%c0_39, %c0_40, %c0_41, %c0_42] : memref<1x1x1x128xf32, #tpu.memory_space<vmem>>, vector<1x1x1x128xf32>
    %54 = vector.shape_cast %53 : vector<1x1x1x128xf32> to vector<1x1x128xf32>
    %55 = arith.maximumf %54, %49 : vector<1x1x128xf32>
    %c0_43 = arith.constant 0 : index
    %c0_44 = arith.constant 0 : index
    %c0_45 = arith.constant 0 : index
    %c0_46 = arith.constant 0 : index
    %56 = vector.load %arg9[%c0_43, %c0_44, %c0_45, %c0_46] : memref<1x1x1x128xf32, #tpu.memory_space<vmem>>, vector<1x1x1x128xf32>
    %57 = vector.shape_cast %56 : vector<1x1x1x128xf32> to vector<1x1x128xf32>
    %58 = vector.shape_cast %55 : vector<1x1x128xf32> to vector<1x1x1x128xf32>
    tpu.vector_store %arg9[%c0_43, %c0_44, %c0_45, %c0_46], %58 {strides = array<i32>} : memref<1x1x1x128xf32, #tpu.memory_space<vmem>>, vector<1x1x1x128xf32>,
    %c0_47 = arith.constant 0 : index
    %c0_48 = arith.constant 0 : index
    %c0_49 = arith.constant 0 : index
    %c0_50 = arith.constant 0 : index
    %59 = vector.load %arg7[%c0_47, %c0_48, %c0_49, %c0_50] : memref<1x1x1x128xf32, #tpu.memory_space<vmem>>, vector<1x1x1x128xf32>
    %60 = vector.shape_cast %59 : vector<1x1x1x128xf32> to vector<1x1x128xf32>
    %61 = vector.broadcast %60 : vector<1x1x128xf32> to vector<8x16x128xf32>
    %62 = arith.mulf %47, %61 : vector<8x16x128xf32>
    %63 = arith.truncf %62 : vector<8x16x128xf32> to vector<8x16x128xbf16>
    %c0_51 = arith.constant 0 : index
    %c0_52 = arith.constant 0 : index
    %c0_53 = arith.constant 0 : index
    %c0_54 = arith.constant 0 : index
    %64 = vector.load %arg8[%c0_51, %c0_52, %c0_53, %c0_54] : memref<1x8x16x128xbf16, #tpu.memory_space<vmem>>, vector<1x8x16x128xbf16>
    %65 = vector.shape_cast %64 : vector<1x8x16x128xbf16> to vector<8x16x128xbf16>
    %66 = vector.shape_cast %63 : vector<8x16x128xbf16> to vector<1x8x16x128xbf16>
    tpu.vector_store %arg8[%c0_51, %c0_52, %c0_53, %c0_54], %66 {strides = array<i32>} : memref<1x8x16x128xbf16, #tpu.memory_space<vmem>>, vector<1x8x16x128xbf16>,
    return
  }
  func.func @transform_0(%arg0: i32, %arg1: i32, %arg2: i32) -> (i32, i32, i32) {
    %c0_i32 = arith.constant 0 : i32
    %c0_i32_0 = arith.constant 0 : i32
    %c0_i32_1 = arith.constant 0 : i32
    return %arg0, %c0_i32, %c0_i32_0 : i32, i32, i32
  }
  func.func @transform_1(%arg0: i32, %arg1: i32, %arg2: i32) -> (i32, i32, i32) {
    %c0_i32 = arith.constant 0 : i32
    %c0_i32_0 = arith.constant 0 : i32
    %c0_i32_1 = arith.constant 0 : i32
    %c0_i32_2 = arith.constant 0 : i32
    return %c0_i32, %c0_i32_0, %c0_i32_1 : i32, i32, i32
  }
  func.func @transform_2(%arg0: i32, %arg1: i32, %arg2: i32) -> (i32, i32, i32) {
    %c0_i32 = arith.constant 0 : i32
    %c0_i32_0 = arith.constant 0 : i32
    %c0_i32_1 = arith.constant 0 : i32
    %c0_i32_2 = arith.constant 0 : i32
    return %c0_i32, %c0_i32_0, %c0_i32_1 : i32, i32, i32
  }
  func.func @transform_3(%arg0: i32, %arg1: i32, %arg2: i32) -> (i32, i32, i32) {
    %c0_i32 = arith.constant 0 : i32
    %c0_i32_0 = arith.constant 0 : i32
    %c0_i32_1 = arith.constant 0 : i32
    %c0_i32_2 = arith.constant 0 : i32
    return %c0_i32, %c0_i32_0, %c0_i32_1 : i32, i32, i32
  }
  func.func @transform_4(%arg0: i32, %arg1: i32, %arg2: i32) -> (i32, i32, i32, i32) {
    %c0_i32 = arith.constant 0 : i32
    %c0_i32_0 = arith.constant 0 : i32
    %c0_i32_1 = arith.constant 0 : i32
    %c0_i32_2 = arith.constant 0 : i32
    return %arg0, %c0_i32, %c0_i32_0, %c0_i32_1 : i32, i32, i32, i32
  }
  func.func @transform_5(%arg0: i32, %arg1: i32, %arg2: i32) -> (i32, i32, i32, i32) {
    %c2_i32 = arith.constant 2 : i32
    %0 = arith.muli %arg1, %c2_i32 : i32
    %1 = arith.addi %0, %arg2 : i32
    %c0_i32 = arith.constant 0 : i32
    %c0_i32_0 = arith.constant 0 : i32
    %c0_i32_1 = arith.constant 0 : i32
    return %arg0, %1, %c0_i32, %c0_i32_0 : i32, i32, i32, i32
  }
  func.func @transform_6(%arg0: i32, %arg1: i32, %arg2: i32) -> (i32, i32, i32, i32) {
    %c0_i32 = arith.constant 0 : i32
    %c0_i32_0 = arith.constant 0 : i32
    %c0_i32_1 = arith.constant 0 : i32
    return %arg0, %arg1, %c0_i32, %c0_i32_0 : i32, i32, i32, i32
  }
}

</mosaic_0001>

<llo_original>
// kernel: tpu_custom_call.1
$region0: #{tpu_custom_call.1}
  #allocation0 [shape = 'u32[]', space=smem, size = 0x4, offset = 0x4, fixed_abs, tag = 'smem constant byte address 0x4 - core index']
  #allocation1 [shape = 'u32[72,128]{1,0:T(1,128)}', space=vmem, size = 0x9000, scoped, tag = 'internal scratch']
  #allocation2 [shape = 'f32[256,128]{1,0:T(8,128)}', space=vmem, size = 0x20000, scoped, tag = 'scratch operand']
  %s0 = inlined_call_operand.vmem [shape: bf16[2,576,12], index: 0, kind: input, shape index: {}]
  %s1 = inlined_call_operand.vmem [shape: bf16[3,12,128], index: 1, kind: input, shape index: {}]
  %s2 = inlined_call_operand.vmem [shape: f32[1,1,128], index: 2, kind: input, shape index: {}]
  %s3 = inlined_call_operand.vmem [shape: f32[1,1,128], index: 3, kind: input, shape index: {}]
  %s4 = inlined_call_operand.vmem [shape: f32[2,1,1,128], index: 4, kind: input, shape index: {}]
  %s5 = inlined_call_operand.hbm [shape: bf16[2,16,16,128], index: 5, kind: output, shape index: {0}]
  %s6 = inlined_call_operand.hbm [shape: f32[2,1,1,128], index: 6, kind: output, shape index: {1}]
  %7 = xla_tuple %s5, %s6
  %s8 = sld [smem:[#allocation0]]
  $region65: #{tpu_custom_call.1} parent=0
    _
  %s10 = ssub.s32 1, %s8
  %s11 = scalar_select 0, %s10, %s8
  $region1: #{tpu_custom_call.1} parent=0
    #allocation3 [shape = 'u8[65536]{0}', space=vmem, size = 0x10000, scoped, tag = 'output window, operand 0']
    #allocation4 [shape = 's32[2]{0}', space=sflag, size = 0x8, scoped, tag = 'scoped memory for tpu_custom_call.1']
    #allocation5 [shape = 'u8[1024]{0}', space=vmem, size = 0x400, scoped, tag = 'output window, operand 1']
    #allocation6 [shape = 's32[2]{0}', space=sflag, size = 0x8, scoped, tag = 'scoped memory for tpu_custom_call.1']
    %12 = vsyncpa [#allocation4], 0
    %s13 = scalar_lea.sflag [#allocation4], 1
    %14 = vsyncpa %s13, 0
    %15 = vsyncpa [#allocation6], 0
    %s16 = scalar_lea.sflag [#allocation6], 1
    %17 = vsyncpa %s16, 0
    loop: start=0, step=1, limit=6
    $region2: #{tpu_custom_call.1} parent=1 // loop_pre_header
      _
    $region3: #{tpu_custom_call.1} parent=1 // loop_header
      %s19 = sphi 0, %s23
      %p20 = scmp.ge.s32.totalorder %s19, 6
      %s26 = sphi 0, %s45
      %s27 = sphi 0, %s41
      %s28 = sphi 0, %s37
      %s29 = sphi 0, %s26
      %s30 = sphi 0, %s27
      %s31 = sphi 0, %s28
      %s32 = sphi 0, %s29
      %s33 = sphi 0, %s30
      %s34 = sphi 0, %s31
      %s48 = sphi 0, %s50
      %s51 = sphi 0, %s48
      %s52 = sphi 0, %s51
      %s68 = sphi 0, %s52
      %s72 = sphi 0, %s72
      %s74 = sphi 0, %s72
      %s75 = sphi 0, %s74
      %s89 = sphi 0, %s75
      %s93 = sphi 0, %s93
      %s95 = sphi 0, %s93
      %s96 = sphi 0, %s95
      %s110 = sphi 0, %s96
      %s114 = sphi 0, %s114
      %s116 = sphi 0, %s114
      %s117 = sphi 0, %s116
      %s131 = sphi 0, %s117
      %s137 = sphi 0, %s139
      %s140 = sphi 0, %s137
      %s141 = sphi 0, %s140
      %s157 = sphi 0, %s141
      %s169 = sphi 0, %s171
      %s172 = sphi 0, %s169
      %s173 = sphi 0, %s172
      %s189 = sphi 0, %s173
      %s197 = sphi 0, %s199
      %s200 = sphi 0, %s197
      %s201 = sphi 0, %s200
      %s217 = sphi 0, %s201
    $region4: #{tpu_custom_call.1} parent=1 // loop_header_branch
      %22 = sbr.rel (%p20) target = $region8
    $region5: #{tpu_custom_call.1} parent=1 // loop_body
      %s24 = ssub.s32 %s19, 1
      %s25 = ssub.s32 %s19, 2
      %s35 = sadd.s32 1, %s28
      %p36 = scmp.ge.s32.totalorder %s35, 2
      %s37 = scalar_select %p36, 0, %s35
      %s38 = sadd.s32 1, %s27
      %s39 = scalar_select %p36, %s38, %s27
      %p40 = scmp.ge.s32.totalorder %s39, 1
      %s41 = scalar_select %p40, 0, %s39
      %s42 = sadd.s32 1, %s26
      %s43 = scalar_select %p40, %s42, %s26
      %p44 = scmp.ge.s32.totalorder %s43, 2
      %s45 = scalar_select %p44, 0, %s43
      %s46 = ssub.s32 %s26, %s45
      %p47 = scmp.eq.s32.totalorder %s46, 0
      %s49 = sadd.s32 %s48, 1
      %s50 = scalar_select %p47, %s48, %s49
      %p53 = pneg %p47
      %p54 = scmp.eq.s32.totalorder %s19, 3
      %p55 = por %p53, %p54
      %p56 = scmp.ne.s32.totalorder %s48, %s51
      %p57 = scmp.eq.s32.totalorder %s19, 0
      %p58 = por %p56, %p57
      %p59 = scmp.ne.s32.totalorder %s48, %s51
      %p60 = scmp.eq.s32.totalorder %s24, 3
      %p61 = por %p59, %p60
      %p62 = scmp.ne.s32.totalorder %s51, %s52
      %p63 = scmp.eq.s32.totalorder %s24, 0
      %p64 = por %p62, %p63
      %p65 = scmp.ne.s32.totalorder %s51, %s52
      %p66 = scmp.eq.s32.totalorder %s25, 3
      %p67 = por %p65, %p66
      %p69 = scmp.ne.s32.totalorder %s52, %s68
      %p70 = scmp.eq.s32.totalorder %s25, 0
      %p71 = por %p69, %p70
      %s73 = sadd.s32 %s72, 1
      %p76 = scmp.eq.s32.totalorder %s19, 3
      %p77 = scmp.ne.s32.totalorder %s72, %s74
      %p78 = scmp.eq.s32.totalorder %s19, 0
      %p79 = por %p77, %p78
      %p80 = scmp.ne.s32.totalorder %s72, %s74
      %p81 = scmp.eq.s32.totalorder %s24, 3
      %p82 = por %p80, %p81
      %p83 = scmp.ne.s32.totalorder %s74, %s75
      %p84 = scmp.eq.s32.totalorder %s24, 0
      %p85 = por %p83, %p84
      %p86 = scmp.ne.s32.totalorder %s74, %s75
      %p87 = scmp.eq.s32.totalorder %s25, 3
      %p88 = por %p86, %p87
      %p90 = scmp.ne.s32.totalorder %s75, %s89
      %p91 = scmp.eq.s32.totalorder %s25, 0
      %p92 = por %p90, %p91
      %s94 = sadd.s32 %s93, 1
      %p97 = scmp.eq.s32.totalorder %s19, 3
      %p98 = scmp.ne.s32.totalorder %s93, %s95
      %p99 = scmp.eq.s32.totalorder %s19, 0
      %p100 = por %p98, %p99
      %p101 = scmp.ne.s32.totalorder %s93, %s95
      %p102 = scmp.eq.s32.totalorder %s24, 3
      %p103 = por %p101, %p102
      %p104 = scmp.ne.s32.totalorder %s95, %s96
      %p105 = scmp.eq.s32.totalorder %s24, 0
      %p106 = por %p104, %p105
      %p107 = scmp.ne.s32.totalorder %s95, %s96
      %p108 = scmp.eq.s32.totalorder %s25, 3
      %p109 = por %p107, %p108
      %p111 = scmp.ne.s32.totalorder %s96, %s110
      %p112 = scmp.eq.s32.totalorder %s25, 0
      %p113 = por %p111, %p112
      %s115 = sadd.s32 %s114, 1
      %p118 = scmp.eq.s32.totalorder %s19, 3
      %p119 = scmp.ne.s32.totalorder %s114, %s116
      %p120 = scmp.eq.s32.totalorder %s19, 0
      %p121 = por %p119, %p120
      %p122 = scmp.ne.s32.totalorder %s114, %s116
      %p123 = scmp.eq.s32.totalorder %s24, 3
      %p124 = por %p122, %p123
      %p125 = scmp.ne.s32.totalorder %s116, %s117
      %p126 = scmp.eq.s32.totalorder %s24, 0
      %p127 = por %p125, %p126
      %p128 = scmp.ne.s32.totalorder %s116, %s117
      %p129 = scmp.eq.s32.totalorder %s25, 3
      %p130 = por %p128, %p129
      %p132 = scmp.ne.s32.totalorder %s117, %s131
      %p133 = scmp.eq.s32.totalorder %s25, 0
      %p134 = por %p132, %p133
      %s135 = ssub.s32 %s26, %s45
      %p136 = scmp.eq.s32.totalorder %s135, 0
      %s138 = sadd.s32 %s137, 1
      %s139 = scalar_select %p136, %s137, %s138
      %p142 = pneg %p136
      %p143 = scmp.eq.s32.totalorder %s19, 3
      %p144 = por %p142, %p143
      %p145 = scmp.ne.s32.totalorder %s137, %s140
      %p146 = scmp.eq.s32.totalorder %s19, 0
      %p147 = por %p145, %p146
      %p148 = scmp.ne.s32.totalorder %s137, %s140
      %p149 = scmp.eq.s32.totalorder %s24, 3
      %p150 = por %p148, %p149
      %p151 = scmp.ne.s32.totalorder %s140, %s141
      %p152 = scmp.eq.s32.totalorder %s24, 0
      %p153 = por %p151, %p152
      %p154 = scmp.ne.s32.totalorder %s140, %s141
      %p155 = scmp.eq.s32.totalorder %s25, 3
      %p156 = por %p154, %p155
      %p158 = scmp.ne.s32.totalorder %s141, %s157
      %p159 = scmp.eq.s32.totalorder %s25, 0
      %p160 = por %p158, %p159
      %s161 = smul.u32 %s27, 2
      %s162 = sadd.s32 %s161, %s28
      %s163 = smul.u32 %s41, 2
      %s164 = sadd.s32 %s163, %s37
      %s165 = ssub.s32 %s26, %s45
      %s166 = ssub.s32 %s162, %s164
      %s167 = sor.u32 %s165, %s166
      %p168 = scmp.eq.s32.totalorder %s167, 0
      %s170 = sadd.s32 %s169, 1
      %s171 = scalar_select %p168, %s169, %s170
      %p174 = pneg %p168
      %p175 = scmp.eq.s32.totalorder %s19, 3
      %p176 = por %p174, %p175
      %p177 = scmp.ne.s32.totalorder %s169, %s172
      %p178 = scmp.eq.s32.totalorder %s19, 0
      %p179 = por %p177, %p178
      %p180 = scmp.ne.s32.totalorder %s169, %s172
      %p181 = scmp.eq.s32.totalorder %s24, 3
      %p182 = por %p180, %p181
      %p183 = scmp.ne.s32.totalorder %s172, %s173
      %p184 = scmp.eq.s32.totalorder %s24, 0
      %p185 = por %p183, %p184
      %p186 = scmp.ne.s32.totalorder %s172, %s173
      %p187 = scmp.eq.s32.totalorder %s25, 3
      %p188 = por %p186, %p187
      %p190 = scmp.ne.s32.totalorder %s173, %s189
      %p191 = scmp.eq.s32.totalorder %s25, 0
      %p192 = por %p190, %p191
      %s193 = ssub.s32 %s26, %s45
      %s194 = ssub.s32 %s27, %s41
      %s195 = sor.u32 %s193, %s194
      %p196 = scmp.eq.s32.totalorder %s195, 0
      %s198 = sadd.s32 %s197, 1
      %s199 = scalar_select %p196, %s197, %s198
      %p202 = pneg %p196
      %p203 = scmp.eq.s32.totalorder %s19, 3
      %p204 = por %p202, %p203
      %p205 = scmp.ne.s32.totalorder %s197, %s200
      %p206 = scmp.eq.s32.totalorder %s19, 0
      %p207 = por %p205, %p206
      %p208 = scmp.ne.s32.totalorder %s197, %s200
      %p209 = scmp.eq.s32.totalorder %s24, 3
      %p210 = por %p208, %p209
      %p211 = scmp.ne.s32.totalorder %s200, %s201
      %p212 = scmp.eq.s32.totalorder %s24, 0
      %p213 = por %p211, %p212
      %p214 = scmp.ne.s32.totalorder %s200, %s201
      %p215 = scmp.eq.s32.totalorder %s25, 3
      %p216 = por %p214, %p215
      %p218 = scmp.ne.s32.totalorder %s201, %s217
      %p219 = scmp.eq.s32.totalorder %s25, 0
      %p220 = por %p218, %p219
      %p221 = scmp.le.s32.totalorder 1, %s19
      %p222 = scmp.lt.s32.totalorder %s19, 5
      %p223 = pnand %p221, %p222
      %p224 = pneg %p223
      // Predicated region
      $region9: #{tpu_custom_call.1} parent=5 // pred_check
        _
      $region10: #{tpu_custom_call.1} parent=5 // pred_check_branch
        %226 = sbr.rel (%p223) target = $region12
      $region11: #{tpu_custom_call.1} parent=5 // pred_region
        %s227 = ssub.s32 %s19, 1
        // Predicated region
        $region13: #{tpu_custom_call.1} parent=11 // pred_check
          %p228 = pneg %p85
        $region14: #{tpu_custom_call.1} parent=11 // pred_check_branch
          %230 = sbr.rel (%p228) target = $region16
        $region15: #{tpu_custom_call.1} parent=11 // pred_region
          _
        $region16: #{tpu_custom_call.1} parent=11 // pred_fallthru
          _
        // Predicated region
        $region17: #{tpu_custom_call.1} parent=11 // pred_check
          %p231 = pneg %p106
        $region18: #{tpu_custom_call.1} parent=11 // pred_check_branch
          %233 = sbr.rel (%p231) target = $region20
        $region19: #{tpu_custom_call.1} parent=11 // pred_region
          _
        $region20: #{tpu_custom_call.1} parent=11 // pred_fallthru
          _
        // Predicated region
        $region21: #{tpu_custom_call.1} parent=11 // pred_check
          %p234 = pneg %p127
        $region22: #{tpu_custom_call.1} parent=11 // pred_check_branch
          %236 = sbr.rel (%p234) target = $region24
        $region23: #{tpu_custom_call.1} parent=11 // pred_region
          _
        $region24: #{tpu_custom_call.1} parent=11 // pred_fallthru
          _
      $region12: #{tpu_custom_call.1} parent=5 // pred_fallthru
        _
      %p237 = scmp.lt.s32.totalorder %s19, 4
      // Predicated region
      $region25: #{tpu_custom_call.1} parent=5 // pred_check
        %p238 = pneg %p237
      $region26: #{tpu_custom_call.1} parent=5 // pred_check_branch
        %240 = sbr.rel (%p238) target = $region28
      $region27: #{tpu_custom_call.1} parent=5 // pred_region
        // Predicated region
        $region29: #{tpu_custom_call.1} parent=27 // pred_check
          %p241 = pneg %p58
        $region30: #{tpu_custom_call.1} parent=27 // pred_check_branch
          %243 = sbr.rel (%p241) target = $region32
        $region31: #{tpu_custom_call.1} parent=27 // pred_region
          %p244 = scmp.lt.s32.totalorder %s26, 1
          %s245 = scalar_select %p244, %s26, 1
          %s246 = smul.addr %s245, 72
          %s247 = smul.addr %s246, 4
          %s248 = scalar_lea.vmem %s0, %s247
        $region32: #{tpu_custom_call.1} parent=27 // pred_fallthru
          _
        // Predicated region
        $region33: #{tpu_custom_call.1} parent=27 // pred_check
          %p249 = pneg %p147
        $region34: #{tpu_custom_call.1} parent=27 // pred_check_branch
          %251 = sbr.rel (%p249) target = $region36
        $region35: #{tpu_custom_call.1} parent=27 // pred_region
          %p252 = scmp.lt.s32.totalorder %s26, 1
          %s253 = scalar_select %p252, %s26, 1
          %s254 = scalar_lea.vmem %s4, %s253
        $region36: #{tpu_custom_call.1} parent=27 // pred_fallthru
          _
      $region28: #{tpu_custom_call.1} parent=5 // pred_fallthru
        _
      %p255 = scmp.le.s32.totalorder 1, %s19
      %p256 = scmp.lt.s32.totalorder %s19, 5
      %p257 = pnand %p255, %p256
      %p258 = pneg %p257
      // Predicated region
      $region37: #{tpu_custom_call.1} parent=5 // pred_check
        _
      $region38: #{tpu_custom_call.1} parent=5 // pred_check_branch
        %260 = sbr.rel (%p257) target = $region40
      $region39: #{tpu_custom_call.1} parent=5 // pred_region
        %s261 = ssub.s32 %s19, 1
        %p262 = scmp.lt.s32.totalorder %s29, 1
        %s263 = scalar_select %p262, %s29, 1
        %s264 = smul.addr %s263, 72
        %s265 = smul.addr %s264, 4
        %s266 = scalar_lea.vmem %s0, %s265
        %p267 = pneg %p64
        %p268 = pneg %p61
        %p269 = pneg %p85
        %p270 = pneg %p82
        %p271 = pneg %p106
        %p272 = pneg %p103
        %p273 = pneg %p127
        %p274 = pneg %p124
        %p275 = scmp.lt.s32.totalorder %s29, 1
        %s276 = scalar_select %p275, %s29, 1
        %s277 = scalar_lea.vmem %s4, %s276
        %p278 = pneg %p153
        %p279 = pneg %p150
        %p280 = pneg %p185
        %p281 = pneg %p182
        %s282 = sand.u32 %s172, 1
        %s283 = scalar_lea.sflag [#allocation4], %s282
        %s284 = sand.u32 %s172, 1
        %s285 = smul.addr %s284, 64
        %s286 = scalar_lea.vmem [#allocation3], %s285
        %p287 = pneg %p213
        %p288 = pneg %p210
        %s289 = sand.u32 %s200, 1
        %s290 = scalar_lea.sflag [#allocation6], %s289
        %s291 = sand.u32 %s200, 1
        %s292 = scalar_lea.vmem [#allocation5], %s291
        %p293 = scmp.lt.s32.totalorder %s29, 1
        %s294 = scalar_select %p293, %s29, 1
        %s295 = smul.addr %s294, 72
        %s296 = smul.addr %s295, 4
        %s297 = scalar_lea.vmem %s0, %s296
        %p298 = scmp.lt.s32.totalorder %s29, 1
        %s299 = scalar_select %p298, %s29, 1
        %s300 = scalar_lea.vmem %s4, %s299
        %s301 = smul.u32 %s30, 2
        %s302 = sadd.s32 %s301, %s31
        %s303 = smul.u32 8, %s302
        %s305 = smul.u32 %s30, 2
        %s306 = sadd.s32 %s305, %s31
        %s307 = smul.u32 %s306, 8
        %s308 = smul.u32 %s306, 256
        %s309 = sshra.s32 %s308, 3
        %s310 = sand.u32 %s308, 7
        %s311 = smul.addr %s309, 4
        %s312 = scalar_lea.vmem %s297, %s311
        %v313 = vld [vmem:[%s312] sm:$0xf]
        %v314 = vld [vmem:[%s312 + $0x4] sm:$0xf]
        %v315 = vld [vmem:[%s312 + $0x8] sm:$0xf]
        %v316 = vld [vmem:[%s312 + $0xc] sm:$0xf]
        %v317 = vld [vmem:[%s312 + $0x10] sm:$0xf]
        %v318 = vld [vmem:[%s312 + $0x14] sm:$0xf]
        %v319 = vld [vmem:[%s312 + $0x18] sm:$0xf]
        %v320 = vld [vmem:[%s312 + $0x1c] sm:$0xf]
        %v321 = vld [vmem:[%s312 + $0x20] sm:$0xf]
        %v322 = vld [vmem:[%s312 + $0x24] sm:$0xf]
        %v323 = vld [vmem:[%s312 + $0x28] sm:$0xf]
        %v324 = vld [vmem:[%s312 + $0x2c] sm:$0xf]
        %v325 = vld [vmem:[%s312 + $0x30] sm:$0xf]
        %v326 = vld [vmem:[%s312 + $0x34] sm:$0xf]
        %v327 = vld [vmem:[%s312 + $0x38] sm:$0xf]
        %v328 = vld [vmem:[%s312 + $0x3c] sm:$0xf]
        %v329 = vld [vmem:[%s312 + $0x40] sm:$0xf]
        %v330 = vld [vmem:[%s312 + $0x44] sm:$0xf]
        %v331 = vld [vmem:[%s312 + $0x48] sm:$0xf]
        %v332 = vld [vmem:[%s312 + $0x4c] sm:$0xf]
        %v333 = vld [vmem:[%s312 + $0x50] sm:$0xf]
        %v334 = vld [vmem:[%s312 + $0x54] sm:$0xf]
        %v335 = vld [vmem:[%s312 + $0x58] sm:$0xf]
        %v336 = vld [vmem:[%s312 + $0x5c] sm:$0xf]
        %v337 = vld [vmem:[%s312 + $0x60] sm:$0xf]
        %v338 = vld [vmem:[%s312 + $0x64] sm:$0xf]
        %v339 = vld [vmem:[%s312 + $0x68] sm:$0xf]
        %v340 = vld [vmem:[%s312 + $0x6c] sm:$0xf]
        %v341 = vld [vmem:[%s312 + $0x70] sm:$0xf]
        %v342 = vld [vmem:[%s312 + $0x74] sm:$0xf]
        %v343 = vld [vmem:[%s312 + $0x78] sm:$0xf]
        %v344 = vld [vmem:[%s312 + $0x7c] sm:$0xf]
        %v345 = vld [vmem:[%s1] sm:$0xf]
        %v346 = vld [vmem:[%s1 + $0x4] sm:$0x3]
        %v379 = vunpack.c.l.b16 %v313
        %v380 = vunpack.c.l.b16 %v314
        %v381 = vunpack.c.l.b16 %v315
        %v382 = vunpack.c.l.b16 %v316
        %v383 = vunpack.c.l.b16 %v317
        %v384 = vunpack.c.l.b16 %v318
        %v385 = vunpack.c.l.b16 %v319
        %v386 = vunpack.c.l.b16 %v320
        %v387 = vunpack.c.l.b16 %v321
        %v388 = vunpack.c.l.b16 %v322
        %v389 = vunpack.c.l.b16 %v323
        %v390 = vunpack.c.l.b16 %v324
        %v391 = vunpack.c.l.b16 %v325
        %v392 = vunpack.c.l.b16 %v326
        %v393 = vunpack.c.l.b16 %v327
        %v394 = vunpack.c.l.b16 %v328
        %v395 = vunpack.c.l.b16 %v329
        %v396 = vunpack.c.l.b16 %v330
        %v397 = vunpack.c.l.b16 %v331
        %v398 = vunpack.c.l.b16 %v332
        %v399 = vunpack.c.l.b16 %v333
        %v400 = vunpack.c.l.b16 %v334
        %v401 = vunpack.c.l.b16 %v335
        %v402 = vunpack.c.l.b16 %v336
        %v403 = vunpack.c.l.b16 %v337
        %v404 = vunpack.c.l.b16 %v338
        %v405 = vunpack.c.l.b16 %v339
        %v406 = vunpack.c.l.b16 %v340
        %v407 = vunpack.c.l.b16 %v341
        %v408 = vunpack.c.l.b16 %v342
        %v409 = vunpack.c.l.b16 %v343
        %v410 = vunpack.c.l.b16 %v344
        %v411 = vpack.c.b16 %v380, %v379
        %v412 = vpack.c.b16 %v382, %v381
        %v413 = vpack.c.b16 %v384, %v383
        %v414 = vpack.c.b16 %v386, %v385
        %v415 = vpack.c.b16 %v388, %v387
        %v416 = vpack.c.b16 %v390, %v389
        %v417 = vpack.c.b16 %v392, %v391
        %v418 = vpack.c.b16 %v394, %v393
        %v419 = vpack.c.b16 %v396, %v395
        %v420 = vpack.c.b16 %v398, %v397
        %v421 = vpack.c.b16 %v400, %v399
        %v422 = vpack.c.b16 %v402, %v401
        %v423 = vpack.c.b16 %v404, %v403
        %v424 = vpack.c.b16 %v406, %v405
        %v425 = vpack.c.b16 %v408, %v407
        %v426 = vpack.c.b16 %v410, %v409
        %v429 = vunpack.c.l.b16 %v345
        %v430 = vunpack.c.l.b16 %v346
        %v431 = vpack.c.b16 %v430, %v429
        %vm432 = vcmask 97280
        %v434 = vsel %vm432, %v411, 0
        %v437 = vsel %vm432, %v412, 0
        %v440 = vsel %vm432, %v413, 0
        %v443 = vsel %vm432, %v414, 0
        %v446 = vsel %vm432, %v415, 0
        %v449 = vsel %vm432, %v416, 0
        %v452 = vsel %vm432, %v417, 0
        %v455 = vsel %vm432, %v418, 0
        %v458 = vsel %vm432, %v419, 0
        %v461 = vsel %vm432, %v420, 0
        %v464 = vsel %vm432, %v421, 0
        %v467 = vsel %vm432, %v422, 0
        %v470 = vsel %vm432, %v423, 0
        %v473 = vsel %vm432, %v424, 0
        %v476 = vsel %vm432, %v425, 0
        %v479 = vsel %vm432, %v426, 0
        %vm481 = vcmask 1045504
        %v483 = vsel %vm481, %v431, 0
        %485 = vmatpush.bf16.msra.mxu0 0
        %486 = vmatpush.bf16.msra.mxu0 0
        %487 = vmatpush.bf16.msra.mxu0 0
        %488 = vmatpush.bf16.msra.mxu0 0
        %489 = vmatpush.bf16.msra.mxu0 0
        %490 = vmatpush.bf16.msra.mxu0 0
        %491 = vmatpush.bf16.msra.mxu0 0
        %492 = vmatpush.bf16.msra.mxu0 %v483
        %493 = vmatmul.bf16.gmra.mxu0 %v434
        %v494 = vpop.f32.mrf.mxu0
        %v495 = vadd.f32 0.0, %v494
        %v496 = vpop.f32.mrf.mxu0
        %v497 = vadd.f32 0.0, %v496
        %498 = vmatmul.bf16.gmra.mxu0 %v437
        %v499 = vpop.f32.mrf.mxu0
        %v500 = vadd.f32 0.0, %v499
        %v501 = vpop.f32.mrf.mxu0
        %v502 = vadd.f32 0.0, %v501
        %503 = vmatmul.bf16.gmra.mxu0 %v440
        %v504 = vpop.f32.mrf.mxu0
        %v505 = vadd.f32 0.0, %v504
        %v506 = vpop.f32.mrf.mxu0
        %v507 = vadd.f32 0.0, %v506
        %508 = vmatmul.bf16.gmra.mxu0 %v443
        %v509 = vpop.f32.mrf.mxu0
        %v510 = vadd.f32 0.0, %v509
        %v511 = vpop.f32.mrf.mxu0
        %v512 = vadd.f32 0.0, %v511
        %513 = vmatmul.bf16.gmra.mxu0 %v446
        %v514 = vpop.f32.mrf.mxu0
        %v515 = vadd.f32 0.0, %v514
        %v516 = vpop.f32.mrf.mxu0
        %v517 = vadd.f32 0.0, %v516
        %518 = vmatmul.bf16.gmra.mxu0 %v449
        %v519 = vpop.f32.mrf.mxu0
        %v520 = vadd.f32 0.0, %v519
        %v521 = vpop.f32.mrf.mxu0
        %v522 = vadd.f32 0.0, %v521
        %523 = vmatmul.bf16.gmra.mxu0 %v452
        %v524 = vpop.f32.mrf.mxu0
        %v525 = vadd.f32 0.0, %v524
        %v526 = vpop.f32.mrf.mxu0
        %v527 = vadd.f32 0.0, %v526
        %528 = vmatmul.bf16.gmra.mxu0 %v455
        %v529 = vpop.f32.mrf.mxu0
        %v530 = vadd.f32 0.0, %v529
        %v531 = vpop.f32.mrf.mxu0
        %v532 = vadd.f32 0.0, %v531
        %533 = vmatmul.bf16.gmra.mxu0 %v458
        %v534 = vpop.f32.mrf.mxu0
        %v535 = vadd.f32 0.0, %v534
        %v536 = vpop.f32.mrf.mxu0
        %v537 = vadd.f32 0.0, %v536
        %538 = vmatmul.bf16.gmra.mxu0 %v461
        %v539 = vpop.f32.mrf.mxu0
        %v540 = vadd.f32 0.0, %v539
        %v541 = vpop.f32.mrf.mxu0
        %v542 = vadd.f32 0.0, %v541
        %543 = vmatmul.bf16.gmra.mxu0 %v464
        %v544 = vpop.f32.mrf.mxu0
        %v545 = vadd.f32 0.0, %v544
        %v546 = vpop.f32.mrf.mxu0
        %v547 = vadd.f32 0.0, %v546
        %548 = vmatmul.bf16.gmra.mxu0 %v467
        %v549 = vpop.f32.mrf.mxu0
        %v550 = vadd.f32 0.0, %v549
        %v551 = vpop.f32.mrf.mxu0
        %v552 = vadd.f32 0.0, %v551
        %553 = vmatmul.bf16.gmra.mxu0 %v470
        %v554 = vpop.f32.mrf.mxu0
        %v555 = vadd.f32 0.0, %v554
        %v556 = vpop.f32.mrf.mxu0
        %v557 = vadd.f32 0.0, %v556
        %558 = vmatmul.bf16.gmra.mxu0 %v473
        %v559 = vpop.f32.mrf.mxu0
        %v560 = vadd.f32 0.0, %v559
        %v561 = vpop.f32.mrf.mxu0
        %v562 = vadd.f32 0.0, %v561
        %563 = vmatmul.bf16.gmra.mxu0 %v476
        %v564 = vpop.f32.mrf.mxu0
        %v565 = vadd.f32 0.0, %v564
        %v566 = vpop.f32.mrf.mxu0
        %v567 = vadd.f32 0.0, %v566
        %568 = vmatmul.bf16.gmra.mxu0 %v479
        %v569 = vpop.f32.mrf.mxu0
        %v570 = vadd.f32 0.0, %v569
        %v571 = vpop.f32.mrf.mxu0
        %v572 = vadd.f32 0.0, %v571
        %573 = vdwg.mxu0
        %574 = vst [vmem:[#allocation2] sm:$0xff] %v495
        %575 = vst [vmem:[#allocation2 + $0x8] sm:$0xff] %v497
        %576 = vst [vmem:[#allocation2 + $0x10] sm:$0xff] %v500
        %577 = vst [vmem:[#allocation2 + $0x18] sm:$0xff] %v502
        %578 = vst [vmem:[#allocation2 + $0x20] sm:$0xff] %v505
        %579 = vst [vmem:[#allocation2 + $0x28] sm:$0xff] %v507
        %580 = vst [vmem:[#allocation2 + $0x30] sm:$0xff] %v510
        %581 = vst [vmem:[#allocation2 + $0x38] sm:$0xff] %v512
        %582 = vst [vmem:[#allocation2 + $0x40] sm:$0xff] %v515
        %583 = vst [vmem:[#allocation2 + $0x48] sm:$0xff] %v517
        %584 = vst [vmem:[#allocation2 + $0x50] sm:$0xff] %v520
        %585 = vst [vmem:[#allocation2 + $0x58] sm:$0xff] %v522
        %586 = vst [vmem:[#allocation2 + $0x60] sm:$0xff] %v525
        %587 = vst [vmem:[#allocation2 + $0x68] sm:$0xff] %v527
        %588 = vst [vmem:[#allocation2 + $0x70] sm:$0xff] %v530
        %589 = vst [vmem:[#allocation2 + $0x78] sm:$0xff] %v532
        %590 = vst [vmem:[#allocation2 + $0x80] sm:$0xff] %v535
        %591 = vst [vmem:[#allocation2 + $0x88] sm:$0xff] %v537
        %592 = vst [vmem:[#allocation2 + $0x90] sm:$0xff] %v540
        %593 = vst [vmem:[#allocation2 + $0x98] sm:$0xff] %v542
        %594 = vst [vmem:[#allocation2 + $0xa0] sm:$0xff] %v545
        %595 = vst [vmem:[#allocation2 + $0xa8] sm:$0xff] %v547
        %596 = vst [vmem:[#allocation2 + $0xb0] sm:$0xff] %v550
        %597 = vst [vmem:[#allocation2 + $0xb8] sm:$0xff] %v552
        %598 = vst [vmem:[#allocation2 + $0xc0] sm:$0xff] %v555
        %599 = vst [vmem:[#allocation2 + $0xc8] sm:$0xff] %v557
        %600 = vst [vmem:[#allocation2 + $0xd0] sm:$0xff] %v560
        %601 = vst [vmem:[#allocation2 + $0xd8] sm:$0xff] %v562
        %602 = vst [vmem:[#allocation2 + $0xe0] sm:$0xff] %v565
        %603 = vst [vmem:[#allocation2 + $0xe8] sm:$0xff] %v567
        %604 = vst [vmem:[#allocation2 + $0xf0] sm:$0xff] %v570
        %605 = vst [vmem:[#allocation2 + $0xf8] sm:$0xff] %v572
        %s606 = sadd.s32 %s307, 1
        %s607 = smul.u32 %s606, 32
        %s608 = sshra.s32 %s607, 3
        %s609 = sand.u32 %s607, 7
        %s610 = smul.addr %s608, 4
        %s611 = scalar_lea.vmem %s297, %s610
        %v612 = vld [vmem:[%s611] sm:$0xf]
        %v613 = vld [vmem:[%s611 + $0x4] sm:$0xf]
        %v614 = vld [vmem:[%s611 + $0x8] sm:$0xf]
        %v615 = vld [vmem:[%s611 + $0xc] sm:$0xf]
        %v616 = vld [vmem:[%s611 + $0x10] sm:$0xf]
        %v617 = vld [vmem:[%s611 + $0x14] sm:$0xf]
        %v618 = vld [vmem:[%s611 + $0x18] sm:$0xf]
        %v619 = vld [vmem:[%s611 + $0x1c] sm:$0xf]
        %v620 = vld [vmem:[%s611 + $0x20] sm:$0xf]
        %v621 = vld [vmem:[%s611 + $0x24] sm:$0xf]
        %v622 = vld [vmem:[%s611 + $0x28] sm:$0xf]
        %v623 = vld [vmem:[%s611 + $0x2c] sm:$0xf]
        %v624 = vld [vmem:[%s611 + $0x30] sm:$0xf]
        %v625 = vld [vmem:[%s611 + $0x34] sm:$0xf]
        %v626 = vld [vmem:[%s611 + $0x38] sm:$0xf]
        %v627 = vld [vmem:[%s611 + $0x3c] sm:$0xf]
        %v628 = vld [vmem:[%s611 + $0x40] sm:$0xf]
        %v629 = vld [vmem:[%s611 + $0x44] sm:$0xf]
        %v630 = vld [vmem:[%s611 + $0x48] sm:$0xf]
        %v631 = vld [vmem:[%s611 + $0x4c] sm:$0xf]
        %v632 = vld [vmem:[%s611 + $0x50] sm:$0xf]
        %v633 = vld [vmem:[%s611 + $0x54] sm:$0xf]
        %v634 = vld [vmem:[%s611 + $0x58] sm:$0xf]
        %v635 = vld [vmem:[%s611 + $0x5c] sm:$0xf]
        %v636 = vld [vmem:[%s611 + $0x60] sm:$0xf]
        %v637 = vld [vmem:[%s611 + $0x64] sm:$0xf]
        %v638 = vld [vmem:[%s611 + $0x68] sm:$0xf]
        %v639 = vld [vmem:[%s611 + $0x6c] sm:$0xf]
        %v640 = vld [vmem:[%s611 + $0x70] sm:$0xf]
        %v641 = vld [vmem:[%s611 + $0x74] sm:$0xf]
        %v642 = vld [vmem:[%s611 + $0x78] sm:$0xf]
        %v643 = vld [vmem:[%s611 + $0x7c] sm:$0xf]
        %s644 = scalar_lea.vmem %s1, 8
        %v645 = vld [vmem:[%s644] sm:$0xf]
        %v646 = vld [vmem:[%s644 + $0x4] sm:$0x3]
        %v679 = vunpack.c.l.b16 %v612
        %v680 = vunpack.c.l.b16 %v613
        %v681 = vunpack.c.l.b16 %v614
        %v682 = vunpack.c.l.b16 %v615
        %v683 = vunpack.c.l.b16 %v616
        %v684 = vunpack.c.l.b16 %v617
        %v685 = vunpack.c.l.b16 %v618
        %v686 = vunpack.c.l.b16 %v619
        %v687 = vunpack.c.l.b16 %v620
        %v688 = vunpack.c.l.b16 %v621
        %v689 = vunpack.c.l.b16 %v622
        %v690 = vunpack.c.l.b16 %v623
        %v691 = vunpack.c.l.b16 %v624
        %v692 = vunpack.c.l.b16 %v625
        %v693 = vunpack.c.l.b16 %v626
        %v694 = vunpack.c.l.b16 %v627
        %v695 = vunpack.c.l.b16 %v628
        %v696 = vunpack.c.l.b16 %v629
        %v697 = vunpack.c.l.b16 %v630
        %v698 = vunpack.c.l.b16 %v631
        %v699 = vunpack.c.l.b16 %v632
        %v700 = vunpack.c.l.b16 %v633
        %v701 = vunpack.c.l.b16 %v634
        %v702 = vunpack.c.l.b16 %v635
        %v703 = vunpack.c.l.b16 %v636
        %v704 = vunpack.c.l.b16 %v637
        %v705 = vunpack.c.l.b16 %v638
        %v706 = vunpack.c.l.b16 %v639
        %v707 = vunpack.c.l.b16 %v640
        %v708 = vunpack.c.l.b16 %v641
        %v709 = vunpack.c.l.b16 %v642
        %v710 = vunpack.c.l.b16 %v643
        %v711 = vpack.c.b16 %v680, %v679
        %v712 = vpack.c.b16 %v682, %v681
        %v713 = vpack.c.b16 %v684, %v683
        %v714 = vpack.c.b16 %v686, %v685
        %v715 = vpack.c.b16 %v688, %v687
        %v716 = vpack.c.b16 %v690, %v689
        %v717 = vpack.c.b16 %v692, %v691
        %v718 = vpack.c.b16 %v694, %v693
        %v719 = vpack.c.b16 %v696, %v695
        %v720 = vpack.c.b16 %v698, %v697
        %v721 = vpack.c.b16 %v700, %v699
        %v722 = vpack.c.b16 %v702, %v701
        %v723 = vpack.c.b16 %v704, %v703
        %v724 = vpack.c.b16 %v706, %v705
        %v725 = vpack.c.b16 %v708, %v707
        %v726 = vpack.c.b16 %v710, %v709
        %v729 = vunpack.c.l.b16 %v645
        %v730 = vunpack.c.l.b16 %v646
        %v731 = vpack.c.b16 %v730, %v729
        %v733 = vsel %vm432, %v711, 0
        %v736 = vsel %vm432, %v712, 0
        %v739 = vsel %vm432, %v713, 0
        %v742 = vsel %vm432, %v714, 0
        %v745 = vsel %vm432, %v715, 0
        %v748 = vsel %vm432, %v716, 0
        %v751 = vsel %vm432, %v717, 0
        %v754 = vsel %vm432, %v718, 0
        %v757 = vsel %vm432, %v719, 0
        %v760 = vsel %vm432, %v720, 0
        %v763 = vsel %vm432, %v721, 0
        %v766 = vsel %vm432, %v722, 0
        %v769 = vsel %vm432, %v723, 0
        %v772 = vsel %vm432, %v724, 0
        %v775 = vsel %vm432, %v725, 0
        %v778 = vsel %vm432, %v726, 0
        %v781 = vsel %vm481, %v731, 0
        %783 = vmatpush.bf16.msra.mxu0 0
        %784 = vmatpush.bf16.msra.mxu0 0
        %785 = vmatpush.bf16.msra.mxu0 0
        %786 = vmatpush.bf16.msra.mxu0 0
        %787 = vmatpush.bf16.msra.mxu0 0
        %788 = vmatpush.bf16.msra.mxu0 0
        %789 = vmatpush.bf16.msra.mxu0 0
        %790 = vmatpush.bf16.msra.mxu0 %v781
        %791 = vmatmul.bf16.gmra.mxu0 %v733
        %v792 = vpop.f32.mrf.mxu0
        %v793 = vadd.f32 0.0, %v792
        %v794 = vpop.f32.mrf.mxu0
        %v795 = vadd.f32 0.0, %v794
        %796 = vmatmul.bf16.gmra.mxu0 %v736
        %v797 = vpop.f32.mrf.mxu0
        %v798 = vadd.f32 0.0, %v797
        %v799 = vpop.f32.mrf.mxu0
        %v800 = vadd.f32 0.0, %v799
        %801 = vmatmul.bf16.gmra.mxu0 %v739
        %v802 = vpop.f32.mrf.mxu0
        %v803 = vadd.f32 0.0, %v802
        %v804 = vpop.f32.mrf.mxu0
        %v805 = vadd.f32 0.0, %v804
        %806 = vmatmul.bf16.gmra.mxu0 %v742
        %v807 = vpop.f32.mrf.mxu0
        %v808 = vadd.f32 0.0, %v807
        %v809 = vpop.f32.mrf.mxu0
        %v810 = vadd.f32 0.0, %v809
        %811 = vmatmul.bf16.gmra.mxu0 %v745
        %v812 = vpop.f32.mrf.mxu0
        %v813 = vadd.f32 0.0, %v812
        %v814 = vpop.f32.mrf.mxu0
        %v815 = vadd.f32 0.0, %v814
        %816 = vmatmul.bf16.gmra.mxu0 %v748
        %v817 = vpop.f32.mrf.mxu0
        %v818 = vadd.f32 0.0, %v817
        %v819 = vpop.f32.mrf.mxu0
        %v820 = vadd.f32 0.0, %v819
        %821 = vmatmul.bf16.gmra.mxu0 %v751
        %v822 = vpop.f32.mrf.mxu0
        %v823 = vadd.f32 0.0, %v822
        %v824 = vpop.f32.mrf.mxu0
        %v825 = vadd.f32 0.0, %v824
        %826 = vmatmul.bf16.gmra.mxu0 %v754
        %v827 = vpop.f32.mrf.mxu0
        %v828 = vadd.f32 0.0, %v827
        %v829 = vpop.f32.mrf.mxu0
        %v830 = vadd.f32 0.0, %v829
        %831 = vmatmul.bf16.gmra.mxu0 %v757
        %v832 = vpop.f32.mrf.mxu0
        %v833 = vadd.f32 0.0, %v832
        %v834 = vpop.f32.mrf.mxu0
        %v835 = vadd.f32 0.0, %v834
        %836 = vmatmul.bf16.gmra.mxu0 %v760
        %v837 = vpop.f32.mrf.mxu0
        %v838 = vadd.f32 0.0, %v837
        %v839 = vpop.f32.mrf.mxu0
        %v840 = vadd.f32 0.0, %v839
        %841 = vmatmul.bf16.gmra.mxu0 %v763
        %v842 = vpop.f32.mrf.mxu0
        %v843 = vadd.f32 0.0, %v842
        %v844 = vpop.f32.mrf.mxu0
        %v845 = vadd.f32 0.0, %v844
        %846 = vmatmul.bf16.gmra.mxu0 %v766
        %v847 = vpop.f32.mrf.mxu0
        %v848 = vadd.f32 0.0, %v847
        %v849 = vpop.f32.mrf.mxu0
        %v850 = vadd.f32 0.0, %v849
        %851 = vmatmul.bf16.gmra.mxu0 %v769
        %v852 = vpop.f32.mrf.mxu0
        %v853 = vadd.f32 0.0, %v852
        %v854 = vpop.f32.mrf.mxu0
        %v855 = vadd.f32 0.0, %v854
        %856 = vmatmul.bf16.gmra.mxu0 %v772
        %v857 = vpop.f32.mrf.mxu0
        %v858 = vadd.f32 0.0, %v857
        %v859 = vpop.f32.mrf.mxu0
        %v860 = vadd.f32 0.0, %v859
        %861 = vmatmul.bf16.gmra.mxu0 %v775
        %v862 = vpop.f32.mrf.mxu0
        %v863 = vadd.f32 0.0, %v862
        %v864 = vpop.f32.mrf.mxu0
        %v865 = vadd.f32 0.0, %v864
        %866 = vmatmul.bf16.gmra.mxu0 %v778
        %v867 = vpop.f32.mrf.mxu0
        %v868 = vadd.f32 0.0, %v867
        %v869 = vpop.f32.mrf.mxu0
        %v870 = vadd.f32 0.0, %v869
        %871 = vdwg.mxu0
        %v872 = vld [vmem:[#allocation2] sm:$0xff]
        %v873 = vld [vmem:[#allocation2 + $0x8] sm:$0xff]
        %v874 = vld [vmem:[#allocation2 + $0x10] sm:$0xff]
        %v875 = vld [vmem:[#allocation2 + $0x18] sm:$0xff]
        %v876 = vld [vmem:[#allocation2 + $0x20] sm:$0xff]
        %v877 = vld [vmem:[#allocation2 + $0x28] sm:$0xff]
        %v878 = vld [vmem:[#allocation2 + $0x30] sm:$0xff]
        %v879 = vld [vmem:[#allocation2 + $0x38] sm:$0xff]
        %v880 = vld [vmem:[#allocation2 + $0x40] sm:$0xff]
        %v881 = vld [vmem:[#allocation2 + $0x48] sm:$0xff]
        %v882 = vld [vmem:[#allocation2 + $0x50] sm:$0xff]
        %v883 = vld [vmem:[#allocation2 + $0x58] sm:$0xff]
        %v884 = vld [vmem:[#allocation2 + $0x60] sm:$0xff]
        %v885 = vld [vmem:[#allocation2 + $0x68] sm:$0xff]
        %v886 = vld [vmem:[#allocation2 + $0x70] sm:$0xff]
        %v887 = vld [vmem:[#allocation2 + $0x78] sm:$0xff]
        %v888 = vld [vmem:[#allocation2 + $0x80] sm:$0xff]
        %v889 = vld [vmem:[#allocation2 + $0x88] sm:$0xff]
        %v890 = vld [vmem:[#allocation2 + $0x90] sm:$0xff]
        %v891 = vld [vmem:[#allocation2 + $0x98] sm:$0xff]
        %v892 = vld [vmem:[#allocation2 + $0xa0] sm:$0xff]
        %v893 = vld [vmem:[#allocation2 + $0xa8] sm:$0xff]
        %v894 = vld [vmem:[#allocation2 + $0xb0] sm:$0xff]
        %v895 = vld [vmem:[#allocation2 + $0xb8] sm:$0xff]
        %v896 = vld [vmem:[#allocation2 + $0xc0] sm:$0xff]
        %v897 = vld [vmem:[#allocation2 + $0xc8] sm:$0xff]
        %v898 = vld [vmem:[#allocation2 + $0xd0] sm:$0xff]
        %v899 = vld [vmem:[#allocation2 + $0xd8] sm:$0xff]
        %v900 = vld [vmem:[#allocation2 + $0xe0] sm:$0xff]
        %v901 = vld [vmem:[#allocation2 + $0xe8] sm:$0xff]
        %v902 = vld [vmem:[#allocation2 + $0xf0] sm:$0xff]
        %v903 = vld [vmem:[#allocation2 + $0xf8] sm:$0xff]
        %v904 = vadd.f32 %v872, %v793
        %v905 = vadd.f32 %v873, %v795
        %v906 = vadd.f32 %v874, %v798
        %v907 = vadd.f32 %v875, %v800
        %v908 = vadd.f32 %v876, %v803
        %v909 = vadd.f32 %v877, %v805
        %v910 = vadd.f32 %v878, %v808
        %v911 = vadd.f32 %v879, %v810
        %v912 = vadd.f32 %v880, %v813
        %v913 = vadd.f32 %v881, %v815
        %v914 = vadd.f32 %v882, %v818
        %v915 = vadd.f32 %v883, %v820
        %v916 = vadd.f32 %v884, %v823
        %v917 = vadd.f32 %v885, %v825
        %v918 = vadd.f32 %v886, %v828
        %v919 = vadd.f32 %v887, %v830
        %v920 = vadd.f32 %v888, %v833
        %v921 = vadd.f32 %v889, %v835
        %v922 = vadd.f32 %v890, %v838
        %v923 = vadd.f32 %v891, %v840
        %v924 = vadd.f32 %v892, %v843
        %v925 = vadd.f32 %v893, %v845
        %v926 = vadd.f32 %v894, %v848
        %v927 = vadd.f32 %v895, %v850
        %v928 = vadd.f32 %v896, %v853
        %v929 = vadd.f32 %v897, %v855
        %v930 = vadd.f32 %v898, %v858
        %v931 = vadd.f32 %v899, %v860
        %v932 = vadd.f32 %v900, %v863
        %v933 = vadd.f32 %v901, %v865
        %v934 = vadd.f32 %v902, %v868
        %v935 = vadd.f32 %v903, %v870
        %936 = vst [vmem:[#allocation2] sm:$0xff] %v904
        %937 = vst [vmem:[#allocation2 + $0x8] sm:$0xff] %v905
        %938 = vst [vmem:[#allocation2 + $0x10] sm:$0xff] %v906
        %939 = vst [vmem:[#allocation2 + $0x18] sm:$0xff] %v907
        %940 = vst [vmem:[#allocation2 + $0x20] sm:$0xff] %v908
        %941 = vst [vmem:[#allocation2 + $0x28] sm:$0xff] %v909
        %942 = vst [vmem:[#allocation2 + $0x30] sm:$0xff] %v910
        %943 = vst [vmem:[#allocation2 + $0x38] sm:$0xff] %v911
        %944 = vst [vmem:[#allocation2 + $0x40] sm:$0xff] %v912
        %945 = vst [vmem:[#allocation2 + $0x48] sm:$0xff] %v913
        %946 = vst [vmem:[#allocation2 + $0x50] sm:$0xff] %v914
        %947 = vst [vmem:[#allocation2 + $0x58] sm:$0xff] %v915
        %948 = vst [vmem:[#allocation2 + $0x60] sm:$0xff] %v916
        %949 = vst [vmem:[#allocation2 + $0x68] sm:$0xff] %v917
        %950 = vst [vmem:[#allocation2 + $0x70] sm:$0xff] %v918
        %951 = vst [vmem:[#allocation2 + $0x78] sm:$0xff] %v919
        %952 = vst [vmem:[#allocation2 + $0x80] sm:$0xff] %v920
        %953 = vst [vmem:[#allocation2 + $0x88] sm:$0xff] %v921
        %954 = vst [vmem:[#allocation2 + $0x90] sm:$0xff] %v922
        %955 = vst [vmem:[#allocation2 + $0x98] sm:$0xff] %v923
        %956 = vst [vmem:[#allocation2 + $0xa0] sm:$0xff] %v924
        %957 = vst [vmem:[#allocation2 + $0xa8] sm:$0xff] %v925
        %958 = vst [vmem:[#allocation2 + $0xb0] sm:$0xff] %v926
        %959 = vst [vmem:[#allocation2 + $0xb8] sm:$0xff] %v927
        %960 = vst [vmem:[#allocation2 + $0xc0] sm:$0xff] %v928
        %961 = vst [vmem:[#allocation2 + $0xc8] sm:$0xff] %v929
        %962 = vst [vmem:[#allocation2 + $0xd0] sm:$0xff] %v930
        %963 = vst [vmem:[#allocation2 + $0xd8] sm:$0xff] %v931
        %964 = vst [vmem:[#allocation2 + $0xe0] sm:$0xff] %v932
        %965 = vst [vmem:[#allocation2 + $0xe8] sm:$0xff] %v933
        %966 = vst [vmem:[#allocation2 + $0xf0] sm:$0xff] %v934
        %967 = vst [vmem:[#allocation2 + $0xf8] sm:$0xff] %v935
        %s968 = sadd.s32 %s307, 2
        %s969 = smul.u32 %s968, 32
        %s970 = sshra.s32 %s969, 3
        %s971 = sand.u32 %s969, 7
        %s972 = smul.addr %s970, 4
        %s973 = scalar_lea.vmem %s297, %s972
        %v974 = vld [vmem:[%s973] sm:$0xf]
        %v975 = vld [vmem:[%s973 + $0x4] sm:$0xf]
        %v976 = vld [vmem:[%s973 + $0x8] sm:$0xf]
        %v977 = vld [vmem:[%s973 + $0xc] sm:$0xf]
        %v978 = vld [vmem:[%s973 + $0x10] sm:$0xf]
        %v979 = vld [vmem:[%s973 + $0x14] sm:$0xf]
        %v980 = vld [vmem:[%s973 + $0x18] sm:$0xf]
        %v981 = vld [vmem:[%s973 + $0x1c] sm:$0xf]
        %v982 = vld [vmem:[%s973 + $0x20] sm:$0xf]
        %v983 = vld [vmem:[%s973 + $0x24] sm:$0xf]
        %v984 = vld [vmem:[%s973 + $0x28] sm:$0xf]
        %v985 = vld [vmem:[%s973 + $0x2c] sm:$0xf]
        %v986 = vld [vmem:[%s973 + $0x30] sm:$0xf]
        %v987 = vld [vmem:[%s973 + $0x34] sm:$0xf]
        %v988 = vld [vmem:[%s973 + $0x38] sm:$0xf]
        %v989 = vld [vmem:[%s973 + $0x3c] sm:$0xf]
        %v990 = vld [vmem:[%s973 + $0x40] sm:$0xf]
        %v991 = vld [vmem:[%s973 + $0x44] sm:$0xf]
        %v992 = vld [vmem:[%s973 + $0x48] sm:$0xf]
        %v993 = vld [vmem:[%s973 + $0x4c] sm:$0xf]
        %v994 = vld [vmem:[%s973 + $0x50] sm:$0xf]
        %v995 = vld [vmem:[%s973 + $0x54] sm:$0xf]
        %v996 = vld [vmem:[%s973 + $0x58] sm:$0xf]
        %v997 = vld [vmem:[%s973 + $0x5c] sm:$0xf]
        %v998 = vld [vmem:[%s973 + $0x60] sm:$0xf]
        %v999 = vld [vmem:[%s973 + $0x64] sm:$0xf]
        %v1000 = vld [vmem:[%s973 + $0x68] sm:$0xf]
        %v1001 = vld [vmem:[%s973 + $0x6c] sm:$0xf]
        %v1002 = vld [vmem:[%s973 + $0x70] sm:$0xf]
        %v1003 = vld [vmem:[%s973 + $0x74] sm:$0xf]
        %v1004 = vld [vmem:[%s973 + $0x78] sm:$0xf]
        %v1005 = vld [vmem:[%s973 + $0x7c] sm:$0xf]
        %s1006 = scalar_lea.vmem %s1, 16
        %v1007 = vld [vmem:[%s1006] sm:$0xf]
        %v1008 = vld [vmem:[%s1006 + $0x4] sm:$0x3]
        %v1041 = vunpack.c.l.b16 %v974
        %v1042 = vunpack.c.l.b16 %v975
        %v1043 = vunpack.c.l.b16 %v976
        %v1044 = vunpack.c.l.b16 %v977
        %v1045 = vunpack.c.l.b16 %v978
        %v1046 = vunpack.c.l.b16 %v979
        %v1047 = vunpack.c.l.b16 %v980
        %v1048 = vunpack.c.l.b16 %v981
        %v1049 = vunpack.c.l.b16 %v982
        %v1050 = vunpack.c.l.b16 %v983
        %v1051 = vunpack.c.l.b16 %v984
        %v1052 = vunpack.c.l.b16 %v985
        %v1053 = vunpack.c.l.b16 %v986
        %v1054 = vunpack.c.l.b16 %v987
        %v1055 = vunpack.c.l.b16 %v988
        %v1056 = vunpack.c.l.b16 %v989
        %v1057 = vunpack.c.l.b16 %v990
        %v1058 = vunpack.c.l.b16 %v991
        %v1059 = vunpack.c.l.b16 %v992
        %v1060 = vunpack.c.l.b16 %v993
        %v1061 = vunpack.c.l.b16 %v994
        %v1062 = vunpack.c.l.b16 %v995
        %v1063 = vunpack.c.l.b16 %v996
        %v1064 = vunpack.c.l.b16 %v997
        %v1065 = vunpack.c.l.b16 %v998
        %v1066 = vunpack.c.l.b16 %v999
        %v1067 = vunpack.c.l.b16 %v1000
        %v1068 = vunpack.c.l.b16 %v1001
        %v1069 = vunpack.c.l.b16 %v1002
        %v1070 = vunpack.c.l.b16 %v1003
        %v1071 = vunpack.c.l.b16 %v1004
        %v1072 = vunpack.c.l.b16 %v1005
        %v1073 = vpack.c.b16 %v1042, %v1041
        %v1074 = vpack.c.b16 %v1044, %v1043
        %v1075 = vpack.c.b16 %v1046, %v1045
        %v1076 = vpack.c.b16 %v1048, %v1047
        %v1077 = vpack.c.b16 %v1050, %v1049
        %v1078 = vpack.c.b16 %v1052, %v1051
        %v1079 = vpack.c.b16 %v1054, %v1053
        %v1080 = vpack.c.b16 %v1056, %v1055
        %v1081 = vpack.c.b16 %v1058, %v1057
        %v1082 = vpack.c.b16 %v1060, %v1059
        %v1083 = vpack.c.b16 %v1062, %v1061
        %v1084 = vpack.c.b16 %v1064, %v1063
        %v1085 = vpack.c.b16 %v1066, %v1065
        %v1086 = vpack.c.b16 %v1068, %v1067
        %v1087 = vpack.c.b16 %v1070, %v1069
        %v1088 = vpack.c.b16 %v1072, %v1071
        %v1091 = vunpack.c.l.b16 %v1007
        %v1092 = vunpack.c.l.b16 %v1008
        %v1093 = vpack.c.b16 %v1092, %v1091
        %v1095 = vsel %vm432, %v1073, 0
        %v1098 = vsel %vm432, %v1074, 0
        %v1101 = vsel %vm432, %v1075, 0
        %v1104 = vsel %vm432, %v1076, 0
        %v1107 = vsel %vm432, %v1077, 0
        %v1110 = vsel %vm432, %v1078, 0
        %v1113 = vsel %vm432, %v1079, 0
        %v1116 = vsel %vm432, %v1080, 0
        %v1119 = vsel %vm432, %v1081, 0
        %v1122 = vsel %vm432, %v1082, 0
        %v1125 = vsel %vm432, %v1083, 0
        %v1128 = vsel %vm432, %v1084, 0
        %v1131 = vsel %vm432, %v1085, 0
        %v1134 = vsel %vm432, %v1086, 0
        %v1137 = vsel %vm432, %v1087, 0
        %v1140 = vsel %vm432, %v1088, 0
        %v1143 = vsel %vm481, %v1093, 0
        %1145 = vmatpush.bf16.msra.mxu0 0
        %1146 = vmatpush.bf16.msra.mxu0 0
        %1147 = vmatpush.bf16.msra.mxu0 0
        %1148 = vmatpush.bf16.msra.mxu0 0
        %1149 = vmatpush.bf16.msra.mxu0 0
        %1150 = vmatpush.bf16.msra.mxu0 0
        %1151 = vmatpush.bf16.msra.mxu0 0
        %1152 = vmatpush.bf16.msra.mxu0 %v1143
        %1153 = vmatmul.bf16.gmra.mxu0 %v1095
        %v1154 = vpop.f32.mrf.mxu0
        %v1155 = vadd.f32 0.0, %v1154
        %v1156 = vpop.f32.mrf.mxu0
        %v1157 = vadd.f32 0.0, %v1156
        %1158 = vmatmul.bf16.gmra.mxu0 %v1098
        %v1159 = vpop.f32.mrf.mxu0
        %v1160 = vadd.f32 0.0, %v1159
        %v1161 = vpop.f32.mrf.mxu0
        %v1162 = vadd.f32 0.0, %v1161
        %1163 = vmatmul.bf16.gmra.mxu0 %v1101
        %v1164 = vpop.f32.mrf.mxu0
        %v1165 = vadd.f32 0.0, %v1164
        %v1166 = vpop.f32.mrf.mxu0
        %v1167 = vadd.f32 0.0, %v1166
        %1168 = vmatmul.bf16.gmra.mxu0 %v1104
        %v1169 = vpop.f32.mrf.mxu0
        %v1170 = vadd.f32 0.0, %v1169
        %v1171 = vpop.f32.mrf.mxu0
        %v1172 = vadd.f32 0.0, %v1171
        %1173 = vmatmul.bf16.gmra.mxu0 %v1107
        %v1174 = vpop.f32.mrf.mxu0
        %v1175 = vadd.f32 0.0, %v1174
        %v1176 = vpop.f32.mrf.mxu0
        %v1177 = vadd.f32 0.0, %v1176
        %1178 = vmatmul.bf16.gmra.mxu0 %v1110
        %v1179 = vpop.f32.mrf.mxu0
        %v1180 = vadd.f32 0.0, %v1179
        %v1181 = vpop.f32.mrf.mxu0
        %v1182 = vadd.f32 0.0, %v1181
        %1183 = vmatmul.bf16.gmra.mxu0 %v1113
        %v1184 = vpop.f32.mrf.mxu0
        %v1185 = vadd.f32 0.0, %v1184
        %v1186 = vpop.f32.mrf.mxu0
        %v1187 = vadd.f32 0.0, %v1186
        %1188 = vmatmul.bf16.gmra.mxu0 %v1116
        %v1189 = vpop.f32.mrf.mxu0
        %v1190 = vadd.f32 0.0, %v1189
        %v1191 = vpop.f32.mrf.mxu0
        %v1192 = vadd.f32 0.0, %v1191
        %1193 = vmatmul.bf16.gmra.mxu0 %v1119
        %v1194 = vpop.f32.mrf.mxu0
        %v1195 = vadd.f32 0.0, %v1194
        %v1196 = vpop.f32.mrf.mxu0
        %v1197 = vadd.f32 0.0, %v1196
        %1198 = vmatmul.bf16.gmra.mxu0 %v1122
        %v1199 = vpop.f32.mrf.mxu0
        %v1200 = vadd.f32 0.0, %v1199
        %v1201 = vpop.f32.mrf.mxu0
        %v1202 = vadd.f32 0.0, %v1201
        %1203 = vmatmul.bf16.gmra.mxu0 %v1125
        %v1204 = vpop.f32.mrf.mxu0
        %v1205 = vadd.f32 0.0, %v1204
        %v1206 = vpop.f32.mrf.mxu0
        %v1207 = vadd.f32 0.0, %v1206
        %1208 = vmatmul.bf16.gmra.mxu0 %v1128
        %v1209 = vpop.f32.mrf.mxu0
        %v1210 = vadd.f32 0.0, %v1209
        %v1211 = vpop.f32.mrf.mxu0
        %v1212 = vadd.f32 0.0, %v1211
        %1213 = vmatmul.bf16.gmra.mxu0 %v1131
        %v1214 = vpop.f32.mrf.mxu0
        %v1215 = vadd.f32 0.0, %v1214
        %v1216 = vpop.f32.mrf.mxu0
        %v1217 = vadd.f32 0.0, %v1216
        %1218 = vmatmul.bf16.gmra.mxu0 %v1134
        %v1219 = vpop.f32.mrf.mxu0
        %v1220 = vadd.f32 0.0, %v1219
        %v1221 = vpop.f32.mrf.mxu0
        %v1222 = vadd.f32 0.0, %v1221
        %1223 = vmatmul.bf16.gmra.mxu0 %v1137
        %v1224 = vpop.f32.mrf.mxu0
        %v1225 = vadd.f32 0.0, %v1224
        %v1226 = vpop.f32.mrf.mxu0
        %v1227 = vadd.f32 0.0, %v1226
        %1228 = vmatmul.bf16.gmra.mxu0 %v1140
        %v1229 = vpop.f32.mrf.mxu0
        %v1230 = vadd.f32 0.0, %v1229
        %v1231 = vpop.f32.mrf.mxu0
        %v1232 = vadd.f32 0.0, %v1231
        %1233 = vdwg.mxu0
        %v1234 = vld [vmem:[#allocation2] sm:$0xff]
        %v1235 = vld [vmem:[#allocation2 + $0x8] sm:$0xff]
        %v1236 = vld [vmem:[#allocation2 + $0x10] sm:$0xff]
        %v1237 = vld [vmem:[#allocation2 + $0x18] sm:$0xff]
        %v1238 = vld [vmem:[#allocation2 + $0x20] sm:$0xff]
        %v1239 = vld [vmem:[#allocation2 + $0x28] sm:$0xff]
        %v1240 = vld [vmem:[#allocation2 + $0x30] sm:$0xff]
        %v1241 = vld [vmem:[#allocation2 + $0x38] sm:$0xff]
        %v1242 = vld [vmem:[#allocation2 + $0x40] sm:$0xff]
        %v1243 = vld [vmem:[#allocation2 + $0x48] sm:$0xff]
        %v1244 = vld [vmem:[#allocation2 + $0x50] sm:$0xff]
        %v1245 = vld [vmem:[#allocation2 + $0x58] sm:$0xff]
        %v1246 = vld [vmem:[#allocation2 + $0x60] sm:$0xff]
        %v1247 = vld [vmem:[#allocation2 + $0x68] sm:$0xff]
        %v1248 = vld [vmem:[#allocation2 + $0x70] sm:$0xff]
        %v1249 = vld [vmem:[#allocation2 + $0x78] sm:$0xff]
        %v1250 = vld [vmem:[#allocation2 + $0x80] sm:$0xff]
        %v1251 = vld [vmem:[#allocation2 + $0x88] sm:$0xff]
        %v1252 = vld [vmem:[#allocation2 + $0x90] sm:$0xff]
        %v1253 = vld [vmem:[#allocation2 + $0x98] sm:$0xff]
        %v1254 = vld [vmem:[#allocation2 + $0xa0] sm:$0xff]
        %v1255 = vld [vmem:[#allocation2 + $0xa8] sm:$0xff]
        %v1256 = vld [vmem:[#allocation2 + $0xb0] sm:$0xff]
        %v1257 = vld [vmem:[#allocation2 + $0xb8] sm:$0xff]
        %v1258 = vld [vmem:[#allocation2 + $0xc0] sm:$0xff]
        %v1259 = vld [vmem:[#allocation2 + $0xc8] sm:$0xff]
        %v1260 = vld [vmem:[#allocation2 + $0xd0] sm:$0xff]
        %v1261 = vld [vmem:[#allocation2 + $0xd8] sm:$0xff]
        %v1262 = vld [vmem:[#allocation2 + $0xe0] sm:$0xff]
        %v1263 = vld [vmem:[#allocation2 + $0xe8] sm:$0xff]
        %v1264 = vld [vmem:[#allocation2 + $0xf0] sm:$0xff]
        %v1265 = vld [vmem:[#allocation2 + $0xf8] sm:$0xff]
        %v1266 = vadd.f32 %v1234, %v1155
        %v1267 = vadd.f32 %v1235, %v1157
        %v1268 = vadd.f32 %v1236, %v1160
        %v1269 = vadd.f32 %v1237, %v1162
        %v1270 = vadd.f32 %v1238, %v1165
        %v1271 = vadd.f32 %v1239, %v1167
        %v1272 = vadd.f32 %v1240, %v1170
        %v1273 = vadd.f32 %v1241, %v1172
        %v1274 = vadd.f32 %v1242, %v1175
        %v1275 = vadd.f32 %v1243, %v1177
        %v1276 = vadd.f32 %v1244, %v1180
        %v1277 = vadd.f32 %v1245, %v1182
        %v1278 = vadd.f32 %v1246, %v1185
        %v1279 = vadd.f32 %v1247, %v1187
        %v1280 = vadd.f32 %v1248, %v1190
        %v1281 = vadd.f32 %v1249, %v1192
        %v1282 = vadd.f32 %v1250, %v1195
        %v1283 = vadd.f32 %v1251, %v1197
        %v1284 = vadd.f32 %v1252, %v1200
        %v1285 = vadd.f32 %v1253, %v1202
        %v1286 = vadd.f32 %v1254, %v1205
        %v1287 = vadd.f32 %v1255, %v1207
        %v1288 = vadd.f32 %v1256, %v1210
        %v1289 = vadd.f32 %v1257, %v1212
        %v1290 = vadd.f32 %v1258, %v1215
        %v1291 = vadd.f32 %v1259, %v1217
        %v1292 = vadd.f32 %v1260, %v1220
        %v1293 = vadd.f32 %v1261, %v1222
        %v1294 = vadd.f32 %v1262, %v1225
        %v1295 = vadd.f32 %v1263, %v1227
        %v1296 = vadd.f32 %v1264, %v1230
        %v1297 = vadd.f32 %v1265, %v1232
        %1298 = vst [vmem:[#allocation2] sm:$0xff] %v1266
        %1299 = vst [vmem:[#allocation2 + $0x8] sm:$0xff] %v1267
        %1300 = vst [vmem:[#allocation2 + $0x10] sm:$0xff] %v1268
        %1301 = vst [vmem:[#allocation2 + $0x18] sm:$0xff] %v1269
        %1302 = vst [vmem:[#allocation2 + $0x20] sm:$0xff] %v1270
        %1303 = vst [vmem:[#allocation2 + $0x28] sm:$0xff] %v1271
        %1304 = vst [vmem:[#allocation2 + $0x30] sm:$0xff] %v1272
        %1305 = vst [vmem:[#allocation2 + $0x38] sm:$0xff] %v1273
        %1306 = vst [vmem:[#allocation2 + $0x40] sm:$0xff] %v1274
        %1307 = vst [vmem:[#allocation2 + $0x48] sm:$0xff] %v1275
        %1308 = vst [vmem:[#allocation2 + $0x50] sm:$0xff] %v1276
        %1309 = vst [vmem:[#allocation2 + $0x58] sm:$0xff] %v1277
        %1310 = vst [vmem:[#allocation2 + $0x60] sm:$0xff] %v1278
        %1311 = vst [vmem:[#allocation2 + $0x68] sm:$0xff] %v1279
        %1312 = vst [vmem:[#allocation2 + $0x70] sm:$0xff] %v1280
        %1313 = vst [vmem:[#allocation2 + $0x78] sm:$0xff] %v1281
        %1314 = vst [vmem:[#allocation2 + $0x80] sm:$0xff] %v1282
        %1315 = vst [vmem:[#allocation2 + $0x88] sm:$0xff] %v1283
        %1316 = vst [vmem:[#allocation2 + $0x90] sm:$0xff] %v1284
        %1317 = vst [vmem:[#allocation2 + $0x98] sm:$0xff] %v1285
        %1318 = vst [vmem:[#allocation2 + $0xa0] sm:$0xff] %v1286
        %1319 = vst [vmem:[#allocation2 + $0xa8] sm:$0xff] %v1287
        %1320 = vst [vmem:[#allocation2 + $0xb0] sm:$0xff] %v1288
        %1321 = vst [vmem:[#allocation2 + $0xb8] sm:$0xff] %v1289
        %1322 = vst [vmem:[#allocation2 + $0xc0] sm:$0xff] %v1290
        %1323 = vst [vmem:[#allocation2 + $0xc8] sm:$0xff] %v1291
        %1324 = vst [vmem:[#allocation2 + $0xd0] sm:$0xff] %v1292
        %1325 = vst [vmem:[#allocation2 + $0xd8] sm:$0xff] %v1293
        %1326 = vst [vmem:[#allocation2 + $0xe0] sm:$0xff] %v1294
        %1327 = vst [vmem:[#allocation2 + $0xe8] sm:$0xff] %v1295
        %1328 = vst [vmem:[#allocation2 + $0xf0] sm:$0xff] %v1296
        %1329 = vst [vmem:[#allocation2 + $0xf8] sm:$0xff] %v1297
        %v1330 = vld [vmem:[#allocation2] sm:$0xff]
        %v1331 = vld [vmem:[#allocation2 + $0x8] sm:$0xff]
        %v1332 = vld [vmem:[#allocation2 + $0x20] sm:$0xff]
        %v1333 = vld [vmem:[#allocation2 + $0x28] sm:$0xff]
        %v1334 = vld [vmem:[#allocation2 + $0x40] sm:$0xff]
        %v1335 = vld [vmem:[#allocation2 + $0x48] sm:$0xff]
        %v1336 = vld [vmem:[#allocation2 + $0x60] sm:$0xff]
        %v1337 = vld [vmem:[#allocation2 + $0x68] sm:$0xff]
        %v1338 = vld [vmem:[#allocation2 + $0x80] sm:$0xff]
        %v1339 = vld [vmem:[#allocation2 + $0x88] sm:$0xff]
        %v1340 = vld [vmem:[#allocation2 + $0xa0] sm:$0xff]
        %v1341 = vld [vmem:[#allocation2 + $0xa8] sm:$0xff]
        %v1342 = vld [vmem:[#allocation2 + $0xc0] sm:$0xff]
        %v1343 = vld [vmem:[#allocation2 + $0xc8] sm:$0xff]
        %v1344 = vld [vmem:[#allocation2 + $0xe0] sm:$0xff]
        %v1345 = vld [vmem:[#allocation2 + $0xe8] sm:$0xff]
        %v1346 = vld [vmem:[%s2] sm:$0x1]
        %v1348 = vperm.slane %v1346, 0
        %v1350 = vmul.f32 %v1330, %v1348
        %v1351 = vmul.f32 %v1331, %v1348
        %v1352 = vmul.f32 %v1332, %v1348
        %v1353 = vmul.f32 %v1333, %v1348
        %v1354 = vmul.f32 %v1334, %v1348
        %v1355 = vmul.f32 %v1335, %v1348
        %v1356 = vmul.f32 %v1336, %v1348
        %v1357 = vmul.f32 %v1337, %v1348
        %v1358 = vmul.f32 %v1338, %v1348
        %v1359 = vmul.f32 %v1339, %v1348
        %v1360 = vmul.f32 %v1340, %v1348
        %v1361 = vmul.f32 %v1341, %v1348
        %v1362 = vmul.f32 %v1342, %v1348
        %v1363 = vmul.f32 %v1343, %v1348
        %v1364 = vmul.f32 %v1344, %v1348
        %v1365 = vmul.f32 %v1345, %v1348
        %v1366 = vld [vmem:[%s3] sm:$0x1]
        %v1368 = vperm.slane %v1366, 0
        %v1370 = vadd.f32 %v1350, %v1368
        %v1371 = vadd.f32 %v1351, %v1368
        %v1372 = vadd.f32 %v1352, %v1368
        %v1373 = vadd.f32 %v1353, %v1368
        %v1374 = vadd.f32 %v1354, %v1368
        %v1375 = vadd.f32 %v1355, %v1368
        %v1376 = vadd.f32 %v1356, %v1368
        %v1377 = vadd.f32 %v1357, %v1368
        %v1378 = vadd.f32 %v1358, %v1368
        %v1379 = vadd.f32 %v1359, %v1368
        %v1380 = vadd.f32 %v1360, %v1368
        %v1381 = vadd.f32 %v1361, %v1368
        %v1382 = vadd.f32 %v1362, %v1368
        %v1383 = vadd.f32 %v1363, %v1368
        %v1384 = vadd.f32 %v1364, %v1368
        %v1385 = vadd.f32 %v1365, %v1368
        %v1386 = vmax.f32 %v1370, 0.0
        %v1387 = vmax.f32 %v1371, 0.0
        %v1388 = vmax.f32 %v1372, 0.0
        %v1389 = vmax.f32 %v1373, 0.0
        %v1390 = vmax.f32 %v1374, 0.0
        %v1391 = vmax.f32 %v1375, 0.0
        %v1392 = vmax.f32 %v1376, 0.0
        %v1393 = vmax.f32 %v1377, 0.0
        %v1394 = vmax.f32 %v1378, 0.0
        %v1395 = vmax.f32 %v1379, 0.0
        %v1396 = vmax.f32 %v1380, 0.0
        %v1397 = vmax.f32 %v1381, 0.0
        %v1398 = vmax.f32 %v1382, 0.0
        %v1399 = vmax.f32 %v1383, 0.0
        %v1400 = vmax.f32 %v1384, 0.0
        %v1401 = vmax.f32 %v1385, 0.0
        %v1402 = vmax.f32 %v1386, %v1390
        %v1403 = vmax.f32 %v1387, %v1391
        %v1404 = vmax.f32 %v1388, %v1392
        %v1405 = vmax.f32 %v1389, %v1393
        %v1406 = vmax.f32 %v1402, %v1394
        %v1407 = vmax.f32 %v1403, %v1395
        %v1408 = vmax.f32 %v1404, %v1396
        %v1409 = vmax.f32 %v1405, %v1397
        %v1410 = vmax.f32 %v1406, %v1398
        %v1411 = vmax.f32 %v1407, %v1399
        %v1412 = vmax.f32 %v1408, %v1400
        %v1413 = vmax.f32 %v1409, %v1401
        %v1414 = vmax.f32 %v1410, %v1411
        %v1415 = vmax.f32 %v1412, %v1413
        %v1416 = vmax.f32 %v1414, %v1415
        %v1417 = vrot.slane %v1416, 4
        %v1418 = vmax.f32 %v1416, %v1417
        %v1419 = vrot.slane %v1418, 2
        %v1420 = vmax.f32 %v1418, %v1419
        %v1421 = vrot.slane %v1420, 1
        %v1422 = vmax.f32 %v1420, %v1421
        %p1423 = scmp.eq.s32.totalorder %s31, 0
        // Predicated region
        $region41: #{tpu_custom_call.1} parent=39 // pred_check
          %p1424 = pneg %p1423
        $region42: #{tpu_custom_call.1} parent=39 // pred_check_branch
          %1426 = sbr.rel (%p1424) target = $region44
        $region43: #{tpu_custom_call.1} parent=39 // pred_region
          %1427 = vst [vmem:[%s292] sm:$0x1] 0.0
        $region44: #{tpu_custom_call.1} parent=39 // pred_fallthru
          _
        %v1428 = vld [vmem:[%s292] sm:$0x1]
        %v1429 = vmax.f32 %v1428, %v1422
        %1430 = vst [vmem:[%s292] sm:$0x1] %v1429
        %v1431 = vld [vmem:[%s300] sm:$0x1]
        %v1433 = vperm.slane %v1431, 0
        %v1435 = vmul.f32 %v1386, %v1433
        %v1436 = vmul.f32 %v1387, %v1433
        %v1437 = vmul.f32 %v1388, %v1433
        %v1438 = vmul.f32 %v1389, %v1433
        %v1439 = vmul.f32 %v1390, %v1433
        %v1440 = vmul.f32 %v1391, %v1433
        %v1441 = vmul.f32 %v1392, %v1433
        %v1442 = vmul.f32 %v1393, %v1433
        %v1443 = vmul.f32 %v1394, %v1433
        %v1444 = vmul.f32 %v1395, %v1433
        %v1445 = vmul.f32 %v1396, %v1433
        %v1446 = vmul.f32 %v1397, %v1433
        %v1447 = vmul.f32 %v1398, %v1433
        %v1448 = vmul.f32 %v1399, %v1433
        %v1449 = vmul.f32 %v1400, %v1433
        %v1450 = vmul.f32 %v1401, %v1433
        %v1451 = vpack.c.bf16 %v1435, %v1435
        %v1452 = vpack.c.bf16 %v1436, %v1436
        %v1453 = vpack.c.bf16 %v1437, %v1437
        %v1454 = vpack.c.bf16 %v1438, %v1438
        %v1455 = vpack.c.bf16 %v1439, %v1439
        %v1456 = vpack.c.bf16 %v1440, %v1440
        %v1457 = vpack.c.bf16 %v1441, %v1441
        %v1458 = vpack.c.bf16 %v1442, %v1442
        %v1459 = vpack.c.bf16 %v1443, %v1443
        %v1460 = vpack.c.bf16 %v1444, %v1444
        %v1461 = vpack.c.bf16 %v1445, %v1445
        %v1462 = vpack.c.bf16 %v1446, %v1446
        %v1463 = vpack.c.bf16 %v1447, %v1447
        %v1464 = vpack.c.bf16 %v1448, %v1448
        %v1465 = vpack.c.bf16 %v1449, %v1449
        %v1466 = vpack.c.bf16 %v1450, %v1450
        %1467 = vst [vmem:[%s286] sm:$0xf] %v1451
        %1468 = vst [vmem:[%s286 + $0x4] sm:$0xf] %v1452
        %1469 = vst [vmem:[%s286 + $0x8] sm:$0xf] %v1453
        %1470 = vst [vmem:[%s286 + $0xc] sm:$0xf] %v1454
        %1471 = vst [vmem:[%s286 + $0x10] sm:$0xf] %v1455
        %1472 = vst [vmem:[%s286 + $0x14] sm:$0xf] %v1456
        %1473 = vst [vmem:[%s286 + $0x18] sm:$0xf] %v1457
        %1474 = vst [vmem:[%s286 + $0x1c] sm:$0xf] %v1458
        %1475 = vst [vmem:[%s286 + $0x20] sm:$0xf] %v1459
        %1476 = vst [vmem:[%s286 + $0x24] sm:$0xf] %v1460
        %1477 = vst [vmem:[%s286 + $0x28] sm:$0xf] %v1461
        %1478 = vst [vmem:[%s286 + $0x2c] sm:$0xf] %v1462
        %1479 = vst [vmem:[%s286 + $0x30] sm:$0xf] %v1463
        %1480 = vst [vmem:[%s286 + $0x34] sm:$0xf] %v1464
        %1481 = vst [vmem:[%s286 + $0x38] sm:$0xf] %v1465
        %1482 = vst [vmem:[%s286 + $0x3c] sm:$0xf] %v1466
        %s1483 = sand.u32 %s172, 1
        %s1484 = scalar_lea.sflag [#allocation4], %s1483
        %s1485 = sand.u32 %s172, 1
        %s1486 = smul.addr %s1485, 64
        %s1487 = scalar_lea.vmem [#allocation3], %s1486
        %s1488 = sand.u32 %s200, 1
        %s1489 = scalar_lea.sflag [#allocation6], %s1488
        %s1490 = sand.u32 %s200, 1
        %s1491 = scalar_lea.vmem [#allocation5], %s1490
        // Predicated region
        $region45: #{tpu_custom_call.1} parent=39 // pred_check
          %p1492 = pneg %p182
        $region46: #{tpu_custom_call.1} parent=39 // pred_check_branch
          %1494 = sbr.rel (%p1492) target = $region48
        $region47: #{tpu_custom_call.1} parent=39 // pred_region
          %s1495 = smul.u32 %s30, 2
          %s1496 = sadd.s32 %s1495, %s31
          %s1497 = smul.u32 8, %s1496
          %1499 = vsyncadd %s1484, 0
          %s1500 = smul.addr %s1497, 2
          %s1501 = smul.addr %s29, 32
          %s1502 = sadd.s32 %s1500, %s1501
          %s1503 = smul.addr %s1502, 4
          %s1504 = scalar_lea.hbm %s5, %s1503
          %s1505 = sshll.u32 %s1487, 4
          %s1506 = int_to_ptr.vmem [resolvable:$true] %s1505
          %s1507 = sshll.u32 %s1504, 4
          %s1508 = int_to_ptr.hbm [resolvable:$true] %s1507
          %1513 = dma.vmem_to_hbm [thread:$0]  %s1506, 1024, %s1508, %s1484, 64, 64, 4
        $region48: #{tpu_custom_call.1} parent=39 // pred_fallthru
          _
        // Predicated region
        $region49: #{tpu_custom_call.1} parent=39 // pred_check
          %p1514 = pneg %p210
        $region50: #{tpu_custom_call.1} parent=39 // pred_check_branch
          %1516 = sbr.rel (%p1514) target = $region52
        $region51: #{tpu_custom_call.1} parent=39 // pred_region
          %1518 = vsyncadd %s1489, 0
          %s1519 = sadd.s32 %s30, %s29
          %s1520 = scalar_lea.hbm %s6, %s1519
          %s1522 = sshll.u32 %s1491, 4
          %s1523 = int_to_ptr.vmem [resolvable:$true] %s1522
          %s1524 = sshll.u32 %s1520, 4
          %s1525 = int_to_ptr.hbm [resolvable:$true] %s1524
          %1527 = dma.vmem_to_hbm [thread:$0]  %s1523, 16, %s1525, %s1489
        $region52: #{tpu_custom_call.1} parent=39 // pred_fallthru
          _
      $region40: #{tpu_custom_call.1} parent=5 // pred_fallthru
        _
      %p1528 = scmp.le.s32.totalorder 2, %s19
      // Predicated region
      $region53: #{tpu_custom_call.1} parent=5 // pred_check
        %p1529 = pneg %p1528
      $region54: #{tpu_custom_call.1} parent=5 // pred_check_branch
        %1531 = sbr.rel (%p1529) target = $region56
      $region55: #{tpu_custom_call.1} parent=5 // pred_region
        %s1532 = ssub.s32 %s19, 2
        // Predicated region
        $region57: #{tpu_custom_call.1} parent=55 // pred_check
          %p1533 = pneg %p188
        $region58: #{tpu_custom_call.1} parent=55 // pred_check_branch
          %1535 = sbr.rel (%p1533) target = $region60
        $region59: #{tpu_custom_call.1} parent=55 // pred_region
          %s1536 = sand.u32 %s173, 1
          %s1537 = scalar_lea.sflag [#allocation4], %s1536
          %s1538 = sand.u32 %s173, 1
          %s1539 = smul.addr %s1538, 64
          %s1540 = scalar_lea.vmem [#allocation3], %s1539
          %1542 = dma.done %s1537, 1024
        $region60: #{tpu_custom_call.1} parent=55 // pred_fallthru
          _
        // Predicated region
        $region61: #{tpu_custom_call.1} parent=55 // pred_check
          %p1543 = pneg %p216
        $region62: #{tpu_custom_call.1} parent=55 // pred_check_branch
          %1545 = sbr.rel (%p1543) target = $region64
        $region63: #{tpu_custom_call.1} parent=55 // pred_region
          %s1546 = sand.u32 %s201, 1
          %s1547 = scalar_lea.sflag [#allocation6], %s1546
          %s1548 = sand.u32 %s201, 1
          %s1549 = scalar_lea.vmem [#allocation5], %s1548
          %1551 = dma.done %s1547, 16
        $region64: #{tpu_custom_call.1} parent=55 // pred_fallthru
          _
      $region56: #{tpu_custom_call.1} parent=5 // pred_fallthru
        _
    $region6: #{tpu_custom_call.1} parent=1 // loop_footer
      %s23 = sadd.s32 1, %s19
    $region7: #{tpu_custom_call.1} parent=1 // loop_footer_branch
      %18 = sbr.rel target = $region3
    $region8: #{tpu_custom_call.1} parent=1 // loop_exit
      _
    %1552 = vsyncpa [#allocation4], 1
    %s1553 = scalar_lea.sflag [#allocation4], 1
    %1554 = vsyncpa %s1553, 1
    %1555 = vsyncpa [#allocation6], 1
    %s1556 = scalar_lea.sflag [#allocation6], 1
    %1557 = vsyncpa %s1556, 1

</llo_original>
